<compile_context>
chip_gen: v6e
topology: v6e:2x2x1
jax: 0.10.0
libtpu: 0.0.40
codegen_flags: <defaults>
</compile_context>

<pallas_src>
import functools

import jax
import jax.numpy as jnp
from jax.experimental import pallas as pl
from jax.experimental.pallas import tpu as pltpu

EPS = 1e-5
VMEM_LIMIT = 48 * 1024 * 1024


def _round_up(x, m):
    return ((x + m - 1) // m) * m


def _pad_vec(v, n):
    return jnp.pad(v.astype(jnp.float32).reshape(1, -1),
                   ((0, 0), (0, n - v.shape[0])))


def _apply_act(y, act):
    if act == "relu":
        return jnp.maximum(y, 0.0)
    if act == "leaky":
        return jnp.where(y >= 0.0, y, 0.2 * y)
    if act == "tanh":
        return jnp.tanh(y)
    return y


# ---------------------------------------------------------------------------
# Fused kernel: stride-1 2x2 conv over a VMEM-resident source plane,
# with bias/BatchNorm scale+shift and activation fused into the epilogue.
# ---------------------------------------------------------------------------
def _conv2x2_kernel(s_ref, w_ref, scale_ref, shift_ref, o_ref, *, act, tr, wo):
    """s_ref: (1, Rs, Ws, Cs) bf16 source plane (whole plane, resident per batch)
       w_ref: (4, Cs, Np) bf16 tap weights (tap k = 2*a + b)
       scale/shift: (1, Np) f32 folded BN / bias
       o_ref: (1, tr*wo, Np) output rows of this grid step (row-major (row, col))."""
    i = pl.program_id(1)
    scale = scale_ref[...]
    shift = shift_ref[...]
    npad = o_ref.shape[2]
    for r in range(tr):
        row = i * tr + r
        acc = jnp.zeros((wo, npad), jnp.float32)
        for a in range(2):
            for b in range(2):
                x = s_ref[0, pl.ds(row + a, 1), b:b + wo, :][0]          # (wo, Cs)
                acc = acc + jnp.dot(x, w_ref[2 * a + b],
                                    preferred_element_type=jnp.float32)
        y = _apply_act(acc * scale + shift, act)
        o_ref[0, r * wo:(r + 1) * wo, :] = y.astype(o_ref.dtype)


def _fused_conv2x2(src, wt, scale_p, shift_p, act, ro, wo, out_dtype):
    """src: (B, ro+1, wo+1, Cs) bf16, wt: (4, Cs, Np) bf16 -> (B, ro, wo, Np)."""
    B, Rs, Ws, Cs = src.shape
    Np = wt.shape[-1]
    tr = min(ro, 8)
    nrt = ro // tr
    out = pl.pallas_call(
        functools.partial(_conv2x2_kernel, act=act, tr=tr, wo=wo),
        out_shape=jax.ShapeDtypeStruct((B, ro * wo, Np), out_dtype),
        grid_spec=pltpu.PrefetchScalarGridSpec(
            num_scalar_prefetch=0,
            grid=(B, nrt),
            in_specs=[
                pl.BlockSpec((1, Rs, Ws, Cs), lambda b, i: (b, 0, 0, 0)),
                pl.BlockSpec((4, Cs, Np), lambda b, i: (0, 0, 0)),
                pl.BlockSpec((1, Np), lambda b, i: (0, 0)),
                pl.BlockSpec((1, Np), lambda b, i: (0, 0)),
            ],
            out_specs=pl.BlockSpec((1, tr * wo, Np), lambda b, i: (b, i, 0)),
        ),
        compiler_params=pltpu.CompilerParams(
            dimension_semantics=("parallel", "parallel"),
            vmem_limit_bytes=VMEM_LIMIT),
    )(src, wt, scale_p, shift_p)
    return out.reshape(B, ro, wo, Np)


# ---------------------------------------------------------------------------
# Fallback kernel for tiny deep layers: K-tiled matmul with f32 accumulator.
# ---------------------------------------------------------------------------
def _matmul_kernel(a_ref, w_ref, scale_ref, shift_ref, o_ref, acc_ref, *, act):
    k = pl.program_id(0)

    @pl.when(k == 0)
    def _():
        acc_ref[...] = jnp.zeros_like(acc_ref)

    acc_ref[...] += jnp.dot(a_ref[...], w_ref[...],
                            preferred_element_type=jnp.float32)

    @pl.when(k == pl.num_programs(0) - 1)
    def _():
        y = _apply_act(acc_ref[...] * scale_ref[...] + shift_ref[...], act)
        o_ref[...] = y.astype(o_ref.dtype)


def _matmul_scale_act(a, w, scale_p, shift_p, act, out_dtype, tk_max=2048):
    M, K = a.shape
    Np = w.shape[-1]
    Mp = _round_up(M, 8)
    if Mp != M:
        a = jnp.pad(a, ((0, Mp - M), (0, 0)))
    if K <= tk_max:
        tk, Kp = K, K
    else:
        tk = tk_max
        Kp = _round_up(K, tk)
        if Kp != K:
            a = jnp.pad(a, ((0, 0), (0, Kp - K)))
            w = jnp.pad(w, ((0, Kp - K), (0, 0)))
    out = pl.pallas_call(
        functools.partial(_matmul_kernel, act=act),
        out_shape=jax.ShapeDtypeStruct((Mp, Np), out_dtype),
        grid_spec=pltpu.PrefetchScalarGridSpec(
            num_scalar_prefetch=0,
            grid=(Kp // tk,),
            in_specs=[
                pl.BlockSpec((Mp, tk), lambda k: (0, k)),
                pl.BlockSpec((tk, Np), lambda k: (k, 0)),
                pl.BlockSpec((1, Np), lambda k: (0, 0)),
                pl.BlockSpec((1, Np), lambda k: (0, 0)),
            ],
            out_specs=pl.BlockSpec((Mp, Np), lambda k: (0, 0)),
            scratch_shapes=[pltpu.VMEM((Mp, Np), jnp.float32)],
        ),
        compiler_params=pltpu.CompilerParams(
            dimension_semantics=("arbitrary",),
            vmem_limit_bytes=VMEM_LIMIT),
    )(a, w, scale_p, shift_p)
    return out[:M]


# ---------------------------------------------------------------------------
# Conv2d(k=4, s=2, p=1)  ==  2x2 stride-1 conv over space-to-depth(2)(pad(x))
# ---------------------------------------------------------------------------
def conv_down(x, w_oihw, scale, shift, act, pad_mode, out_dtype):
    B, H, W, Cin = x.shape
    Cout = w_oihw.shape[0]
    Ho, Wo = H // 2, W // 2
    Np = _round_up(Cout, 128)
    scale_p, shift_p = _pad_vec(scale, Np), _pad_vec(shift, Np)

    mode = "reflect" if pad_mode == "reflect" else "constant"
    xp = jnp.pad(x, ((0, 0), (1, 1), (1, 1), (0, 0)), mode=mode)
    # space-to-depth(2): (B, Ho+1, Wo+1, 4*Cin), channel order (di, dj, ci)
    S = xp.reshape(B, Ho + 1, 2, Wo + 1, 2, Cin)
    S = S.transpose(0, 1, 3, 2, 4, 5).reshape(B, Ho + 1, Wo + 1, 4 * Cin)
    S = S.astype(jnp.bfloat16)

    # tap k = 2*a + b reads S[oh+a, ow+b];  kernel element (kh, kw) = (2a+di, 2b+dj)
    w6 = w_oihw.reshape(Cout, Cin, 2, 2, 2, 2)            # (co, ci, a, di, b, dj)
    wt = jnp.transpose(w6, (2, 4, 3, 5, 1, 0)).reshape(4, 4 * Cin, Cout)
    wt = jnp.pad(wt, ((0, 0), (0, 0), (0, Np - Cout))).astype(jnp.bfloat16)

    if Wo % 8 == 0:
        out = _fused_conv2x2(S, wt, scale_p, shift_p, act, Ho, Wo, out_dtype)
    else:
        cols = [S[:, a:a + Ho, b:b + Wo, :] for a in range(2) for b in range(2)]
        amat = jnp.concatenate(cols, axis=-1).reshape(B * Ho * Wo, 16 * Cin)
        out = _matmul_scale_act(amat, wt.reshape(16 * Cin, Np),
                                scale_p, shift_p, act, out_dtype)
        out = out.reshape(B, Ho, Wo, Np)
    return out[..., :Cout]


# ---------------------------------------------------------------------------
# ConvTranspose2d(k=4, s=2, p=1)  ==  4 output phases, each a 2x2 stride-1 conv
# ---------------------------------------------------------------------------
def conv_up(x, w_iohw, scale, shift, act, out_dtype):
    B, H, W, Cin = x.shape
    Cout = w_iohw.shape[1]
    Np = _round_up(Cout, 128)
    scale_p, shift_p = _pad_vec(scale, Np), _pad_vec(shift, Np)

    xp = jnp.pad(x, ((0, 0), (1, 1), (1, 1), (0, 0))).astype(jnp.bfloat16)

    rows = []
    for dh in range(2):
        cols_out = []
        for dw in range(2):
            # out[2p+dh, 2q+dw] = sum_{a,b} xp[p+dh+a, q+dw+b] @ w[:, :, 3-dh-2a, 3-dw-2b]
            taps = [w_iohw[:, :, 3 - dh - 2 * a, 3 - dw - 2 * b]
                    for a in range(2) for b in range(2)]
            wt = jnp.stack(taps, axis=0)                            # (4, Cin, Cout)
            wt = jnp.pad(wt, ((0, 0), (0, 0), (0, Np - Cout))).astype(jnp.bfloat16)
            S = xp[:, dh:dh + H + 1, dw:dw + W + 1, :]              # (B, H+1, W+1, Cin)
            if W % 8 == 0:
                out_ph = _fused_conv2x2(S, wt, scale_p, shift_p, act, H, W, out_dtype)
            else:
                cc = [S[:, a:a + H, b:b + W, :] for a in range(2) for b in range(2)]
                amat = jnp.concatenate(cc, axis=-1).reshape(B * H * W, 4 * Cin)
                out_ph = _matmul_scale_act(amat, wt.reshape(4 * Cin, Np),
                                           scale_p, shift_p, act, out_dtype)
                out_ph = out_ph.reshape(B, H, W, Np)
            cols_out.append(out_ph[..., :Cout])
        rows.append(jnp.stack(cols_out, axis=3))                    # (B, H, W, 2, C)
    y = jnp.stack(rows, axis=2)                                     # (B, H, 2, W, 2, C)
    return y.reshape(B, 2 * H, 2 * W, Cout)


def _bn_fold(gamma, beta, mean, var, bias=None):
    scale = gamma / jnp.sqrt(var + EPS)
    b = jnp.zeros_like(mean) if bias is None else bias
    shift = (b - mean) * scale + beta
    return scale, shift


# ---------------------------------------------------------------------------
# Deterministic parameter init (same shapes as the PyTorch module __init__)
# ---------------------------------------------------------------------------
def init_generator_params(key, in_channels=4, out_channels=3, features=64):
    state = {"key": key}

    def nxt():
        state["key"], sub = jax.random.split(state["key"])
        return sub

    def conv_w(cout, cin):
        return 0.05 * jax.random.normal(nxt(), (cout, cin, 4, 4), jnp.float32)

    def convt_w(cin, cout):
        return 0.05 * jax.random.normal(nxt(), (cin, cout, 4, 4), jnp.float32)

    def bn(c):
        return dict(gamma=jnp.ones((c,), jnp.float32),
                    beta=jnp.zeros((c,), jnp.float32),
                    mean=jnp.zeros((c,), jnp.float32),
                    var=jnp.ones((c,), jnp.float32))

    f = features
    params = {}
    params["initial"] = dict(w=conv_w(f, in_channels),
                             b=0.01 * jax.random.normal(nxt(), (f,), jnp.float32))
    down_ch = [(f, 2 * f), (2 * f, 4 * f), (4 * f, 8 * f),
               (8 * f, 8 * f), (8 * f, 8 * f), (8 * f, 8 * f)]
    params["downs"] = [dict(w=conv_w(co, ci), bn=bn(co)) for ci, co in down_ch]
    params["bottleneck"] = dict(w=conv_w(8 * f, 8 * f),
                                b=0.01 * jax.random.normal(nxt(), (8 * f,), jnp.float32))
    up_ch = [(8 * f, 8 * f), (16 * f, 8 * f), (16 * f, 8 * f), (16 * f, 8 * f),
             (16 * f, 4 * f), (8 * f, 2 * f), (4 * f, f)]
    params["ups"] = [dict(w=convt_w(ci, co), bn=bn(co)) for ci, co in up_ch]
    params["final"] = dict(w=convt_w(2 * f, out_channels),
                           b=0.01 * jax.random.normal(nxt(), (out_channels,), jnp.float32))
    return params


# ---------------------------------------------------------------------------
# Generator forward (matches pix2pix Generator.forward)
# ---------------------------------------------------------------------------
def generator_forward(params, x_nchw):
    x = jnp.transpose(x_nchw, (0, 2, 3, 1))  # NCHW -> NHWC
    bf = jnp.bfloat16

    def ones(c):
        return jnp.ones((c,), jnp.float32)

    # initial_down: Conv(reflect, bias) + LeakyReLU(0.2)
    p = params["initial"]
    d1 = conv_down(x, p["w"], ones(p["w"].shape[0]), p["b"], "leaky", "reflect", bf)

    # down1..down6: Conv(reflect, no bias) + BN + LeakyReLU(0.2)
    skips = [d1]
    h = d1
    for blk in params["downs"]:
        scale, shift = _bn_fold(**blk["bn"])
        h = conv_down(h, blk["w"], scale, shift, "leaky", "reflect", bf)
        skips.append(h)

    # bottleneck: Conv(zero pad, bias) + ReLU
    p = params["bottleneck"]
    u = conv_down(h, p["w"], ones(p["w"].shape[0]), p["b"], "relu", "zeros", bf)

    # up1..up7: ConvT(no bias) + BN + ReLU (+ Dropout)
    for i, blk in enumerate(params["ups"]):
        scale, shift = _bn_fold(**blk["bn"])
        inp = u if i == 0 else jnp.concatenate([u, skips[7 - i]], axis=-1)
        u = conv_up(inp, blk["w"], scale, shift, "relu", bf)
        # TODO(synk): Dropout(0.5) is identity in inference mode; training-mode RNG masking not modeled.

    # final_up: ConvT(bias) + Tanh on cat([u7, d1])
    p = params["final"]
    fin = conv_up(jnp.concatenate([u, skips[0]], axis=-1),
                  p["w"], ones(p["w"].shape[1]), p["b"], "tanh", jnp.float32)
    return jnp.transpose(fin, (0, 3, 1, 2))  # NHWC -> NCHW


# ---------------------------------------------------------------------------
# XLA references for the per-op correctness checks
# ---------------------------------------------------------------------------
def _ref_conv_down(x, w_oihw, bias, pad_mode):
    mode = "reflect" if pad_mode == "reflect" else "constant"
    xp = jnp.pad(x, ((0, 0), (1, 1), (1, 1), (0, 0)), mode=mode)
    y = jax.lax.conv_general_dilated(
        xp, jnp.transpose(w_oihw, (2, 3, 1, 0)),
        window_strides=(2, 2), padding="VALID",
        dimension_numbers=("NHWC", "HWIO", "NHWC"))
    return y + bias


def _ref_conv_up(x, w_iohw, bias):
    wf = jnp.transpose(w_iohw[:, :, ::-1, ::-1], (2, 3, 0, 1))
    y = jax.lax.conv_general_dilated(
        x, wf, window_strides=(1, 1), padding=((2, 2), (2, 2)),
        lhs_dilation=(2, 2), dimension_numbers=("NHWC", "HWIO", "NHWC"))
    return y + bias


if __name__ == "__main__":
    key = jax.random.PRNGKey(0)
    pkey, xkey, ckey = jax.random.split(key, 3)

    # --- small per-op correctness checks (bf16 compute vs f32 XLA reference) ---
    cks = jax.random.split(ckey, 8)

    def _check(got, ref, tag):
        err = float(jnp.max(jnp.abs(got.astype(jnp.float32) - ref)))
        assert err < 5e-2, (tag, err)

    xd = jax.random.normal(cks[0], (1, 16, 16, 4), jnp.float32)
    wd = 0.1 * jax.random.normal(cks[1], (8, 4, 4, 4), jnp.float32)
    bd = 0.1 * jax.random.normal(cks[2], (8,), jnp.float32)
    got = conv_down(xd, wd, jnp.ones((8,), jnp.float32), bd, "leaky", "reflect", jnp.float32)
    _check(got, _apply_act(_ref_conv_down(xd, wd, bd, "reflect"), "leaky"), "down_fused")

    xs = jax.random.normal(cks[3], (1, 8, 8, 8), jnp.float32)
    ws = 0.1 * jax.random.normal(cks[4], (16, 8, 4, 4), jnp.float32)
    got = conv_down(xs, ws, jnp.ones((16,), jnp.float32), jnp.zeros((16,), jnp.float32),
                    "relu", "zeros", jnp.float32)
    _check(got, _apply_act(_ref_conv_down(xs, ws, jnp.zeros((16,), jnp.float32), "zeros"),
                           "relu"), "down_small")

    xu = jax.random.normal(cks[5], (1, 8, 8, 8), jnp.float32)
    wu = 0.1 * jax.random.normal(cks[6], (8, 16, 4, 4), jnp.float32)
    bu = 0.1 * jax.random.normal(cks[7], (16,), jnp.float32)
    got = conv_up(xu, wu, jnp.ones((16,), jnp.float32), bu, "relu", jnp.float32)
    _check(got, _apply_act(_ref_conv_up(xu, wu, bu), "relu"), "up_fused")

    xu2 = xu[:, :4, :4, :]
    got = conv_up(xu2, wu, jnp.ones((16,), jnp.float32), bu, "relu", jnp.float32)
    _check(got, _apply_act(_ref_conv_up(xu2, wu, bu), "relu"), "up_small")

    # --- full generator forward ------------------------------------------------
    # 8 stride-2 downsamplings require spatial >= 256; keep batch/features small.
    features = 8
    params = init_generator_params(pkey, in_channels=4, out_channels=3, features=features)
    x = jax.random.normal(xkey, (1, 4, 256, 256), jnp.float32)

    fwd = jax.jit(generator_forward)
    y = jax.block_until_ready(fwd(params, x))

    assert y.shape == (1, 3, 256, 256), y.shape
    assert y.dtype == jnp.float32
    assert bool(jnp.all(jnp.isfinite(y)))
    assert bool(jnp.all(jnp.abs(y) <= 1.0 + 1e-6))  # tanh output range
    print("KERNEL_OK")
</pallas_src>

<mosaic_0001>
module attributes {stable_mosaic.version = 11 : i64} {
  func.func @_conv2x2_kernel(%arg0: i32, %arg1: i32, %arg2: memref<1x9x9x16xbf16, #tpu.memory_space<vmem>>, %arg3: memref<4x16x128xbf16, #tpu.memory_space<vmem>>, %arg4: memref<1x128xf32, #tpu.memory_space<vmem>>, %arg5: memref<1x128xf32, #tpu.memory_space<vmem>>, %arg6: memref<1x64x128xf32, #tpu.memory_space<vmem>>) attributes {dimension_semantics = [#tpu.dimension_semantics<parallel>, #tpu.dimension_semantics<parallel>], iteration_bounds = array<i64: 1, 1>, scalar_prefetch = 0 : i64, scratch_operands = 0 : i64, tpu.core_type = #tpu.core_type<tc>, window_params = [{transform_indices = @transform_0, window_bounds = array<i64: 1, 9, 9, 16>}, {pipeline_mode = #tpu.pipeline_mode<synchronous>, transform_indices = @transform_1, window_bounds = array<i64: 4, 16, 128>}, {pipeline_mode = #tpu.pipeline_mode<synchronous>, transform_indices = @transform_2, window_bounds = array<i64: 1, 128>}, {pipeline_mode = #tpu.pipeline_mode<synchronous>, transform_indices = @transform_3, window_bounds = array<i64: 1, 128>}, {transform_indices = @transform_4, window_bounds = array<i64: 1, 64, 128>}]} {
    %c0 = arith.constant 0 : index
    %c0_0 = arith.constant 0 : index
    %0 = vector.load %arg4[%c0, %c0_0] : memref<1x128xf32, #tpu.memory_space<vmem>>, vector<1x128xf32>
    %c0_1 = arith.constant 0 : index
    %c0_2 = arith.constant 0 : index
    %1 = vector.load %arg5[%c0_1, %c0_2] : memref<1x128xf32, #tpu.memory_space<vmem>>, vector<1x128xf32>
    %c8_i32 = arith.constant 8 : i32
    %2 = arith.muli %arg1, %c8_i32 : i32
    %c0_i32 = arith.constant 0 : i32
    %3 = arith.addi %2, %c0_i32 : i32
    %cst = arith.constant 0.000000e+00 : f32
    %4 = vector.broadcast %cst : f32 to vector<8x128xf32>
    %c0_i32_3 = arith.constant 0 : i32
    %5 = arith.addi %3, %c0_i32_3 : i32
    %c0_4 = arith.constant 0 : index
    %6 = arith.index_cast %5 : i32 to index
    %c0_5 = arith.constant 0 : index
    %c0_6 = arith.constant 0 : index
    %7 = vector.load %arg2[%c0_4, %6, %c0_5, %c0_6] : memref<1x9x9x16xbf16, #tpu.memory_space<vmem>>, vector<1x1x8x16xbf16>
    %8 = vector.shape_cast %7 : vector<1x1x8x16xbf16> to vector<1x8x16xbf16>
    %9 = vector.shape_cast %8 : vector<1x8x16xbf16> to vector<8x16xbf16>
    %c0_7 = arith.constant 0 : index
    %c0_8 = arith.constant 0 : index
    %c0_9 = arith.constant 0 : index
    %10 = vector.load %arg3[%c0_7, %c0_8, %c0_9] : memref<4x16x128xbf16, #tpu.memory_space<vmem>>, vector<1x16x128xbf16>
    %11 = vector.shape_cast %10 : vector<1x16x128xbf16> to vector<16x128xbf16>
    %cst_10 = arith.constant dense<0.000000e+00> : vector<8x128xf32>
    %12 = tpu.matmul %9, %11, %cst_10 {dimension_numbers = #tpu.dot_dimension_numbers<[1], [0], [0], [1], [0, 0, 1, 1], [], []>} : vector<8x16xbf16>, vector<16x128xbf16>, vector<8x128xf32> -> vector<8x128xf32>
    %13 = arith.addf %4, %12 : vector<8x128xf32>
    %c0_i32_11 = arith.constant 0 : i32
    %14 = arith.addi %3, %c0_i32_11 : i32
    %c0_12 = arith.constant 0 : index
    %15 = arith.index_cast %14 : i32 to index
    %c1 = arith.constant 1 : index
    %c0_13 = arith.constant 0 : index
    %16 = vector.load %arg2[%c0_12, %15, %c1, %c0_13] : memref<1x9x9x16xbf16, #tpu.memory_space<vmem>>, vector<1x1x8x16xbf16>
    %17 = vector.shape_cast %16 : vector<1x1x8x16xbf16> to vector<1x8x16xbf16>
    %18 = vector.shape_cast %17 : vector<1x8x16xbf16> to vector<8x16xbf16>
    %c1_14 = arith.constant 1 : index
    %c0_15 = arith.constant 0 : index
    %c0_16 = arith.constant 0 : index
    %19 = vector.load %arg3[%c1_14, %c0_15, %c0_16] : memref<4x16x128xbf16, #tpu.memory_space<vmem>>, vector<1x16x128xbf16>
    %20 = vector.shape_cast %19 : vector<1x16x128xbf16> to vector<16x128xbf16>
    %cst_17 = arith.constant dense<0.000000e+00> : vector<8x128xf32>
    %21 = tpu.matmul %18, %20, %cst_17 {dimension_numbers = #tpu.dot_dimension_numbers<[1], [0], [0], [1], [0, 0, 1, 1], [], []>} : vector<8x16xbf16>, vector<16x128xbf16>, vector<8x128xf32> -> vector<8x128xf32>
    %22 = arith.addf %13, %21 : vector<8x128xf32>
    %c1_i32 = arith.constant 1 : i32
    %23 = arith.addi %3, %c1_i32 : i32
    %c0_18 = arith.constant 0 : index
    %24 = arith.index_cast %23 : i32 to index
    %c0_19 = arith.constant 0 : index
    %c0_20 = arith.constant 0 : index
    %25 = vector.load %arg2[%c0_18, %24, %c0_19, %c0_20] : memref<1x9x9x16xbf16, #tpu.memory_space<vmem>>, vector<1x1x8x16xbf16>
    %26 = vector.shape_cast %25 : vector<1x1x8x16xbf16> to vector<1x8x16xbf16>
    %27 = vector.shape_cast %26 : vector<1x8x16xbf16> to vector<8x16xbf16>
    %c2 = arith.constant 2 : index
    %c0_21 = arith.constant 0 : index
    %c0_22 = arith.constant 0 : index
    %28 = vector.load %arg3[%c2, %c0_21, %c0_22] : memref<4x16x128xbf16, #tpu.memory_space<vmem>>, vector<1x16x128xbf16>
    %29 = vector.shape_cast %28 : vector<1x16x128xbf16> to vector<16x128xbf16>
    %cst_23 = arith.constant dense<0.000000e+00> : vector<8x128xf32>
    %30 = tpu.matmul %27, %29, %cst_23 {dimension_numbers = #tpu.dot_dimension_numbers<[1], [0], [0], [1], [0, 0, 1, 1], [], []>} : vector<8x16xbf16>, vector<16x128xbf16>, vector<8x128xf32> -> vector<8x128xf32>
    %31 = arith.addf %22, %30 : vector<8x128xf32>
    %c1_i32_24 = arith.constant 1 : i32
    %32 = arith.addi %3, %c1_i32_24 : i32
    %c0_25 = arith.constant 0 : index
    %33 = arith.index_cast %32 : i32 to index
    %c1_26 = arith.constant 1 : index
    %c0_27 = arith.constant 0 : index
    %34 = vector.load %arg2[%c0_25, %33, %c1_26, %c0_27] : memref<1x9x9x16xbf16, #tpu.memory_space<vmem>>, vector<1x1x8x16xbf16>
    %35 = vector.shape_cast %34 : vector<1x1x8x16xbf16> to vector<1x8x16xbf16>
    %36 = vector.shape_cast %35 : vector<1x8x16xbf16> to vector<8x16xbf16>
    %c3 = arith.constant 3 : index
    %c0_28 = arith.constant 0 : index
    %c0_29 = arith.constant 0 : index
    %37 = vector.load %arg3[%c3, %c0_28, %c0_29] : memref<4x16x128xbf16, #tpu.memory_space<vmem>>, vector<1x16x128xbf16>
    %38 = vector.shape_cast %37 : vector<1x16x128xbf16> to vector<16x128xbf16>
    %cst_30 = arith.constant dense<0.000000e+00> : vector<8x128xf32>
    %39 = tpu.matmul %36, %38, %cst_30 {dimension_numbers = #tpu.dot_dimension_numbers<[1], [0], [0], [1], [0, 0, 1, 1], [], []>} : vector<8x16xbf16>, vector<16x128xbf16>, vector<8x128xf32> -> vector<8x128xf32>
    %40 = arith.addf %31, %39 : vector<8x128xf32>
    %41 = vector.broadcast %0 : vector<1x128xf32> to vector<8x128xf32>
    %42 = arith.mulf %40, %41 : vector<8x128xf32>
    %43 = vector.broadcast %1 : vector<1x128xf32> to vector<8x128xf32>
    %44 = arith.addf %42, %43 : vector<8x128xf32>
    %cst_31 = arith.constant 0.000000e+00 : f32
    %45 = vector.broadcast %cst_31 : f32 to vector<8x128xf32>
    %46 = arith.cmpf oge, %44, %45 : vector<8x128xf32>
    %cst_32 = arith.constant 2.000000e-01 : f32
    %47 = vector.broadcast %cst_32 : f32 to vector<8x128xf32>
    %48 = arith.mulf %47, %44 : vector<8x128xf32>
    %49 = arith.select %46, %44, %48 : vector<8x128xi1>, vector<8x128xf32>
    %c0_33 = arith.constant 0 : index
    %c0_34 = arith.constant 0 : index
    %c0_35 = arith.constant 0 : index
    %50 = vector.load %arg6[%c0_33, %c0_34, %c0_35] : memref<1x64x128xf32, #tpu.memory_space<vmem>>, vector<1x8x128xf32>
    %51 = vector.shape_cast %50 : vector<1x8x128xf32> to vector<8x128xf32>
    %52 = vector.shape_cast %49 : vector<8x128xf32> to vector<1x8x128xf32>
    tpu.vector_store %arg6[%c0_33, %c0_34, %c0_35], %52 {strides = array<i32>} : memref<1x64x128xf32, #tpu.memory_space<vmem>>, vector<1x8x128xf32>,
    %c8_i32_36 = arith.constant 8 : i32
    %53 = arith.muli %arg1, %c8_i32_36 : i32
    %c1_i32_37 = arith.constant 1 : i32
    %54 = arith.addi %53, %c1_i32_37 : i32
    %cst_38 = arith.constant 0.000000e+00 : f32
    %55 = vector.broadcast %cst_38 : f32 to vector<8x128xf32>
    %c0_i32_39 = arith.constant 0 : i32
    %56 = arith.addi %54, %c0_i32_39 : i32
    %c0_40 = arith.constant 0 : index
    %57 = arith.index_cast %56 : i32 to index
    %c0_41 = arith.constant 0 : index
    %c0_42 = arith.constant 0 : index
    %58 = vector.load %arg2[%c0_40, %57, %c0_41, %c0_42] : memref<1x9x9x16xbf16, #tpu.memory_space<vmem>>, vector<1x1x8x16xbf16>
    %59 = vector.shape_cast %58 : vector<1x1x8x16xbf16> to vector<1x8x16xbf16>
    %60 = vector.shape_cast %59 : vector<1x8x16xbf16> to vector<8x16xbf16>
    %c0_43 = arith.constant 0 : index
    %c0_44 = arith.constant 0 : index
    %c0_45 = arith.constant 0 : index
    %61 = vector.load %arg3[%c0_43, %c0_44, %c0_45] : memref<4x16x128xbf16, #tpu.memory_space<vmem>>, vector<1x16x128xbf16>
    %62 = vector.shape_cast %61 : vector<1x16x128xbf16> to vector<16x128xbf16>
    %cst_46 = arith.constant dense<0.000000e+00> : vector<8x128xf32>
    %63 = tpu.matmul %60, %62, %cst_46 {dimension_numbers = #tpu.dot_dimension_numbers<[1], [0], [0], [1], [0, 0, 1, 1], [], []>} : vector<8x16xbf16>, vector<16x128xbf16>, vector<8x128xf32> -> vector<8x128xf32>
    %64 = arith.addf %55, %63 : vector<8x128xf32>
    %c0_i32_47 = arith.constant 0 : i32
    %65 = arith.addi %54, %c0_i32_47 : i32
    %c0_48 = arith.constant 0 : index
    %66 = arith.index_cast %65 : i32 to index
    %c1_49 = arith.constant 1 : index
    %c0_50 = arith.constant 0 : index
    %67 = vector.load %arg2[%c0_48, %66, %c1_49, %c0_50] : memref<1x9x9x16xbf16, #tpu.memory_space<vmem>>, vector<1x1x8x16xbf16>
    %68 = vector.shape_cast %67 : vector<1x1x8x16xbf16> to vector<1x8x16xbf16>
    %69 = vector.shape_cast %68 : vector<1x8x16xbf16> to vector<8x16xbf16>
    %c1_51 = arith.constant 1 : index
    %c0_52 = arith.constant 0 : index
    %c0_53 = arith.constant 0 : index
    %70 = vector.load %arg3[%c1_51, %c0_52, %c0_53] : memref<4x16x128xbf16, #tpu.memory_space<vmem>>, vector<1x16x128xbf16>
    %71 = vector.shape_cast %70 : vector<1x16x128xbf16> to vector<16x128xbf16>
    %cst_54 = arith.constant dense<0.000000e+00> : vector<8x128xf32>
    %72 = tpu.matmul %69, %71, %cst_54 {dimension_numbers = #tpu.dot_dimension_numbers<[1], [0], [0], [1], [0, 0, 1, 1], [], []>} : vector<8x16xbf16>, vector<16x128xbf16>, vector<8x128xf32> -> vector<8x128xf32>
    %73 = arith.addf %64, %72 : vector<8x128xf32>
    %c1_i32_55 = arith.constant 1 : i32
    %74 = arith.addi %54, %c1_i32_55 : i32
    %c0_56 = arith.constant 0 : index
    %75 = arith.index_cast %74 : i32 to index
    %c0_57 = arith.constant 0 : index
    %c0_58 = arith.constant 0 : index
    %76 = vector.load %arg2[%c0_56, %75, %c0_57, %c0_58] : memref<1x9x9x16xbf16, #tpu.memory_space<vmem>>, vector<1x1x8x16xbf16>
    %77 = vector.shape_cast %76 : vector<1x1x8x16xbf16> to vector<1x8x16xbf16>
    %78 = vector.shape_cast %77 : vector<1x8x16xbf16> to vector<8x16xbf16>
    %c2_59 = arith.constant 2 : index
    %c0_60 = arith.constant 0 : index
    %c0_61 = arith.constant 0 : index
    %79 = vector.load %arg3[%c2_59, %c0_60, %c0_61] : memref<4x16x128xbf16, #tpu.memory_space<vmem>>, vector<1x16x128xbf16>
    %80 = vector.shape_cast %79 : vector<1x16x128xbf16> to vector<16x128xbf16>
    %cst_62 = arith.constant dense<0.000000e+00> : vector<8x128xf32>
    %81 = tpu.matmul %78, %80, %cst_62 {dimension_numbers = #tpu.dot_dimension_numbers<[1], [0], [0], [1], [0, 0, 1, 1], [], []>} : vector<8x16xbf16>, vector<16x128xbf16>, vector<8x128xf32> -> vector<8x128xf32>
    %82 = arith.addf %73, %81 : vector<8x128xf32>
    %c1_i32_63 = arith.constant 1 : i32
    %83 = arith.addi %54, %c1_i32_63 : i32
    %c0_64 = arith.constant 0 : index
    %84 = arith.index_cast %83 : i32 to index
    %c1_65 = arith.constant 1 : index
    %c0_66 = arith.constant 0 : index
    %85 = vector.load %arg2[%c0_64, %84, %c1_65, %c0_66] : memref<1x9x9x16xbf16, #tpu.memory_space<vmem>>, vector<1x1x8x16xbf16>
    %86 = vector.shape_cast %85 : vector<1x1x8x16xbf16> to vector<1x8x16xbf16>
    %87 = vector.shape_cast %86 : vector<1x8x16xbf16> to vector<8x16xbf16>
    %c3_67 = arith.constant 3 : index
    %c0_68 = arith.constant 0 : index
    %c0_69 = arith.constant 0 : index
    %88 = vector.load %arg3[%c3_67, %c0_68, %c0_69] : memref<4x16x128xbf16, #tpu.memory_space<vmem>>, vector<1x16x128xbf16>
    %89 = vector.shape_cast %88 : vector<1x16x128xbf16> to vector<16x128xbf16>
    %cst_70 = arith.constant dense<0.000000e+00> : vector<8x128xf32>
    %90 = tpu.matmul %87, %89, %cst_70 {dimension_numbers = #tpu.dot_dimension_numbers<[1], [0], [0], [1], [0, 0, 1, 1], [], []>} : vector<8x16xbf16>, vector<16x128xbf16>, vector<8x128xf32> -> vector<8x128xf32>
    %91 = arith.addf %82, %90 : vector<8x128xf32>
    %92 = vector.broadcast %0 : vector<1x128xf32> to vector<8x128xf32>
    %93 = arith.mulf %91, %92 : vector<8x128xf32>
    %94 = vector.broadcast %1 : vector<1x128xf32> to vector<8x128xf32>
    %95 = arith.addf %93, %94 : vector<8x128xf32>
    %cst_71 = arith.constant 0.000000e+00 : f32
    %96 = vector.broadcast %cst_71 : f32 to vector<8x128xf32>
    %97 = arith.cmpf oge, %95, %96 : vector<8x128xf32>
    %cst_72 = arith.constant 2.000000e-01 : f32
    %98 = vector.broadcast %cst_72 : f32 to vector<8x128xf32>
    %99 = arith.mulf %98, %95 : vector<8x128xf32>
    %100 = arith.select %97, %95, %99 : vector<8x128xi1>, vector<8x128xf32>
    %c0_73 = arith.constant 0 : index
    %c8 = arith.constant 8 : index
    %c0_74 = arith.constant 0 : index
    %101 = vector.load %arg6[%c0_73, %c8, %c0_74] : memref<1x64x128xf32, #tpu.memory_space<vmem>>, vector<1x8x128xf32>
    %102 = vector.shape_cast %101 : vector<1x8x128xf32> to vector<8x128xf32>
    %103 = vector.shape_cast %100 : vector<8x128xf32> to vector<1x8x128xf32>
    tpu.vector_store %arg6[%c0_73, %c8, %c0_74], %103 {strides = array<i32>} : memref<1x64x128xf32, #tpu.memory_space<vmem>>, vector<1x8x128xf32>,
    %c8_i32_75 = arith.constant 8 : i32
    %104 = arith.muli %arg1, %c8_i32_75 : i32
    %c2_i32 = arith.constant 2 : i32
    %105 = arith.addi %104, %c2_i32 : i32
    %cst_76 = arith.constant 0.000000e+00 : f32
    %106 = vector.broadcast %cst_76 : f32 to vector<8x128xf32>
    %c0_i32_77 = arith.constant 0 : i32
    %107 = arith.addi %105, %c0_i32_77 : i32
    %c0_78 = arith.constant 0 : index
    %108 = arith.index_cast %107 : i32 to index
    %c0_79 = arith.constant 0 : index
    %c0_80 = arith.constant 0 : index
    %109 = vector.load %arg2[%c0_78, %108, %c0_79, %c0_80] : memref<1x9x9x16xbf16, #tpu.memory_space<vmem>>, vector<1x1x8x16xbf16>
    %110 = vector.shape_cast %109 : vector<1x1x8x16xbf16> to vector<1x8x16xbf16>
    %111 = vector.shape_cast %110 : vector<1x8x16xbf16> to vector<8x16xbf16>
    %c0_81 = arith.constant 0 : index
    %c0_82 = arith.constant 0 : index
    %c0_83 = arith.constant 0 : index
    %112 = vector.load %arg3[%c0_81, %c0_82, %c0_83] : memref<4x16x128xbf16, #tpu.memory_space<vmem>>, vector<1x16x128xbf16>
    %113 = vector.shape_cast %112 : vector<1x16x128xbf16> to vector<16x128xbf16>
    %cst_84 = arith.constant dense<0.000000e+00> : vector<8x128xf32>
    %114 = tpu.matmul %111, %113, %cst_84 {dimension_numbers = #tpu.dot_dimension_numbers<[1], [0], [0], [1], [0, 0, 1, 1], [], []>} : vector<8x16xbf16>, vector<16x128xbf16>, vector<8x128xf32> -> vector<8x128xf32>
    %115 = arith.addf %106, %114 : vector<8x128xf32>
    %c0_i32_85 = arith.constant 0 : i32
    %116 = arith.addi %105, %c0_i32_85 : i32
    %c0_86 = arith.constant 0 : index
    %117 = arith.index_cast %116 : i32 to index
    %c1_87 = arith.constant 1 : index
    %c0_88 = arith.constant 0 : index
    %118 = vector.load %arg2[%c0_86, %117, %c1_87, %c0_88] : memref<1x9x9x16xbf16, #tpu.memory_space<vmem>>, vector<1x1x8x16xbf16>
    %119 = vector.shape_cast %118 : vector<1x1x8x16xbf16> to vector<1x8x16xbf16>
    %120 = vector.shape_cast %119 : vector<1x8x16xbf16> to vector<8x16xbf16>
    %c1_89 = arith.constant 1 : index
    %c0_90 = arith.constant 0 : index
    %c0_91 = arith.constant 0 : index
    %121 = vector.load %arg3[%c1_89, %c0_90, %c0_91] : memref<4x16x128xbf16, #tpu.memory_space<vmem>>, vector<1x16x128xbf16>
    %122 = vector.shape_cast %121 : vector<1x16x128xbf16> to vector<16x128xbf16>
    %cst_92 = arith.constant dense<0.000000e+00> : vector<8x128xf32>
    %123 = tpu.matmul %120, %122, %cst_92 {dimension_numbers = #tpu.dot_dimension_numbers<[1], [0], [0], [1], [0, 0, 1, 1], [], []>} : vector<8x16xbf16>, vector<16x128xbf16>, vector<8x128xf32> -> vector<8x128xf32>
    %124 = arith.addf %115, %123 : vector<8x128xf32>
    %c1_i32_93 = arith.constant 1 : i32
    %125 = arith.addi %105, %c1_i32_93 : i32
    %c0_94 = arith.constant 0 : index
    %126 = arith.index_cast %125 : i32 to index
    %c0_95 = arith.constant 0 : index
    %c0_96 = arith.constant 0 : index
    %127 = vector.load %arg2[%c0_94, %126, %c0_95, %c0_96] : memref<1x9x9x16xbf16, #tpu.memory_space<vmem>>, vector<1x1x8x16xbf16>
    %128 = vector.shape_cast %127 : vector<1x1x8x16xbf16> to vector<1x8x16xbf16>
    %129 = vector.shape_cast %128 : vector<1x8x16xbf16> to vector<8x16xbf16>
    %c2_97 = arith.constant 2 : index
    %c0_98 = arith.constant 0 : index
    %c0_99 = arith.constant 0 : index
    %130 = vector.load %arg3[%c2_97, %c0_98, %c0_99] : memref<4x16x128xbf16, #tpu.memory_space<vmem>>, vector<1x16x128xbf16>
    %131 = vector.shape_cast %130 : vector<1x16x128xbf16> to vector<16x128xbf16>
    %cst_100 = arith.constant dense<0.000000e+00> : vector<8x128xf32>
    %132 = tpu.matmul %129, %131, %cst_100 {dimension_numbers = #tpu.dot_dimension_numbers<[1], [0], [0], [1], [0, 0, 1, 1], [], []>} : vector<8x16xbf16>, vector<16x128xbf16>, vector<8x128xf32> -> vector<8x128xf32>
    %133 = arith.addf %124, %132 : vector<8x128xf32>
    %c1_i32_101 = arith.constant 1 : i32
    %134 = arith.addi %105, %c1_i32_101 : i32
    %c0_102 = arith.constant 0 : index
    %135 = arith.index_cast %134 : i32 to index
    %c1_103 = arith.constant 1 : index
    %c0_104 = arith.constant 0 : index
    %136 = vector.load %arg2[%c0_102, %135, %c1_103, %c0_104] : memref<1x9x9x16xbf16, #tpu.memory_space<vmem>>, vector<1x1x8x16xbf16>
    %137 = vector.shape_cast %136 : vector<1x1x8x16xbf16> to vector<1x8x16xbf16>
    %138 = vector.shape_cast %137 : vector<1x8x16xbf16> to vector<8x16xbf16>
    %c3_105 = arith.constant 3 : index
    %c0_106 = arith.constant 0 : index
    %c0_107 = arith.constant 0 : index
    %139 = vector.load %arg3[%c3_105, %c0_106, %c0_107] : memref<4x16x128xbf16, #tpu.memory_space<vmem>>, vector<1x16x128xbf16>
    %140 = vector.shape_cast %139 : vector<1x16x128xbf16> to vector<16x128xbf16>
    %cst_108 = arith.constant dense<0.000000e+00> : vector<8x128xf32>
    %141 = tpu.matmul %138, %140, %cst_108 {dimension_numbers = #tpu.dot_dimension_numbers<[1], [0], [0], [1], [0, 0, 1, 1], [], []>} : vector<8x16xbf16>, vector<16x128xbf16>, vector<8x128xf32> -> vector<8x128xf32>
    %142 = arith.addf %133, %141 : vector<8x128xf32>
    %143 = vector.broadcast %0 : vector<1x128xf32> to vector<8x128xf32>
    %144 = arith.mulf %142, %143 : vector<8x128xf32>
    %145 = vector.broadcast %1 : vector<1x128xf32> to vector<8x128xf32>
    %146 = arith.addf %144, %145 : vector<8x128xf32>
    %cst_109 = arith.constant 0.000000e+00 : f32
    %147 = vector.broadcast %cst_109 : f32 to vector<8x128xf32>
    %148 = arith.cmpf oge, %146, %147 : vector<8x128xf32>
    %cst_110 = arith.constant 2.000000e-01 : f32
    %149 = vector.broadcast %cst_110 : f32 to vector<8x128xf32>
    %150 = arith.mulf %149, %146 : vector<8x128xf32>
    %151 = arith.select %148, %146, %150 : vector<8x128xi1>, vector<8x128xf32>
    %c0_111 = arith.constant 0 : index
    %c16 = arith.constant 16 : index
    %c0_112 = arith.constant 0 : index
    %152 = vector.load %arg6[%c0_111, %c16, %c0_112] : memref<1x64x128xf32, #tpu.memory_space<vmem>>, vector<1x8x128xf32>
    %153 = vector.shape_cast %152 : vector<1x8x128xf32> to vector<8x128xf32>
    %154 = vector.shape_cast %151 : vector<8x128xf32> to vector<1x8x128xf32>
    tpu.vector_store %arg6[%c0_111, %c16, %c0_112], %154 {strides = array<i32>} : memref<1x64x128xf32, #tpu.memory_space<vmem>>, vector<1x8x128xf32>,
    %c8_i32_113 = arith.constant 8 : i32
    %155 = arith.muli %arg1, %c8_i32_113 : i32
    %c3_i32 = arith.constant 3 : i32
    %156 = arith.addi %155, %c3_i32 : i32
    %cst_114 = arith.constant 0.000000e+00 : f32
    %157 = vector.broadcast %cst_114 : f32 to vector<8x128xf32>
    %c0_i32_115 = arith.constant 0 : i32
    %158 = arith.addi %156, %c0_i32_115 : i32
    %c0_116 = arith.constant 0 : index
    %159 = arith.index_cast %158 : i32 to index
    %c0_117 = arith.constant 0 : index
    %c0_118 = arith.constant 0 : index
    %160 = vector.load %arg2[%c0_116, %159, %c0_117, %c0_118] : memref<1x9x9x16xbf16, #tpu.memory_space<vmem>>, vector<1x1x8x16xbf16>
    %161 = vector.shape_cast %160 : vector<1x1x8x16xbf16> to vector<1x8x16xbf16>
    %162 = vector.shape_cast %161 : vector<1x8x16xbf16> to vector<8x16xbf16>
    %c0_119 = arith.constant 0 : index
    %c0_120 = arith.constant 0 : index
    %c0_121 = arith.constant 0 : index
    %163 = vector.load %arg3[%c0_119, %c0_120, %c0_121] : memref<4x16x128xbf16, #tpu.memory_space<vmem>>, vector<1x16x128xbf16>
    %164 = vector.shape_cast %163 : vector<1x16x128xbf16> to vector<16x128xbf16>
    %cst_122 = arith.constant dense<0.000000e+00> : vector<8x128xf32>
    %165 = tpu.matmul %162, %164, %cst_122 {dimension_numbers = #tpu.dot_dimension_numbers<[1], [0], [0], [1], [0, 0, 1, 1], [], []>} : vector<8x16xbf16>, vector<16x128xbf16>, vector<8x128xf32> -> vector<8x128xf32>
    %166 = arith.addf %157, %165 : vector<8x128xf32>
    %c0_i32_123 = arith.constant 0 : i32
    %167 = arith.addi %156, %c0_i32_123 : i32
    %c0_124 = arith.constant 0 : index
    %168 = arith.index_cast %167 : i32 to index
    %c1_125 = arith.constant 1 : index
    %c0_126 = arith.constant 0 : index
    %169 = vector.load %arg2[%c0_124, %168, %c1_125, %c0_126] : memref<1x9x9x16xbf16, #tpu.memory_space<vmem>>, vector<1x1x8x16xbf16>
    %170 = vector.shape_cast %169 : vector<1x1x8x16xbf16> to vector<1x8x16xbf16>
    %171 = vector.shape_cast %170 : vector<1x8x16xbf16> to vector<8x16xbf16>
    %c1_127 = arith.constant 1 : index
    %c0_128 = arith.constant 0 : index
    %c0_129 = arith.constant 0 : index
    %172 = vector.load %arg3[%c1_127, %c0_128, %c0_129] : memref<4x16x128xbf16, #tpu.memory_space<vmem>>, vector<1x16x128xbf16>
    %173 = vector.shape_cast %172 : vector<1x16x128xbf16> to vector<16x128xbf16>
    %cst_130 = arith.constant dense<0.000000e+00> : vector<8x128xf32>
    %174 = tpu.matmul %171, %173, %cst_130 {dimension_numbers = #tpu.dot_dimension_numbers<[1], [0], [0], [1], [0, 0, 1, 1], [], []>} : vector<8x16xbf16>, vector<16x128xbf16>, vector<8x128xf32> -> vector<8x128xf32>
    %175 = arith.addf %166, %174 : vector<8x128xf32>
    %c1_i32_131 = arith.constant 1 : i32
    %176 = arith.addi %156, %c1_i32_131 : i32
    %c0_132 = arith.constant 0 : index
    %177 = arith.index_cast %176 : i32 to index
    %c0_133 = arith.constant 0 : index
    %c0_134 = arith.constant 0 : index
    %178 = vector.load %arg2[%c0_132, %177, %c0_133, %c0_134] : memref<1x9x9x16xbf16, #tpu.memory_space<vmem>>, vector<1x1x8x16xbf16>
    %179 = vector.shape_cast %178 : vector<1x1x8x16xbf16> to vector<1x8x16xbf16>
    %180 = vector.shape_cast %179 : vector<1x8x16xbf16> to vector<8x16xbf16>
    %c2_135 = arith.constant 2 : index
    %c0_136 = arith.constant 0 : index
    %c0_137 = arith.constant 0 : index
    %181 = vector.load %arg3[%c2_135, %c0_136, %c0_137] : memref<4x16x128xbf16, #tpu.memory_space<vmem>>, vector<1x16x128xbf16>
    %182 = vector.shape_cast %181 : vector<1x16x128xbf16> to vector<16x128xbf16>
    %cst_138 = arith.constant dense<0.000000e+00> : vector<8x128xf32>
    %183 = tpu.matmul %180, %182, %cst_138 {dimension_numbers = #tpu.dot_dimension_numbers<[1], [0], [0], [1], [0, 0, 1, 1], [], []>} : vector<8x16xbf16>, vector<16x128xbf16>, vector<8x128xf32> -> vector<8x128xf32>
    %184 = arith.addf %175, %183 : vector<8x128xf32>
    %c1_i32_139 = arith.constant 1 : i32
    %185 = arith.addi %156, %c1_i32_139 : i32
    %c0_140 = arith.constant 0 : index
    %186 = arith.index_cast %185 : i32 to index
    %c1_141 = arith.constant 1 : index
    %c0_142 = arith.constant 0 : index
    %187 = vector.load %arg2[%c0_140, %186, %c1_141, %c0_142] : memref<1x9x9x16xbf16, #tpu.memory_space<vmem>>, vector<1x1x8x16xbf16>
    %188 = vector.shape_cast %187 : vector<1x1x8x16xbf16> to vector<1x8x16xbf16>
    %189 = vector.shape_cast %188 : vector<1x8x16xbf16> to vector<8x16xbf16>
    %c3_143 = arith.constant 3 : index
    %c0_144 = arith.constant 0 : index
    %c0_145 = arith.constant 0 : index
    %190 = vector.load %arg3[%c3_143, %c0_144, %c0_145] : memref<4x16x128xbf16, #tpu.memory_space<vmem>>, vector<1x16x128xbf16>
    %191 = vector.shape_cast %190 : vector<1x16x128xbf16> to vector<16x128xbf16>
    %cst_146 = arith.constant dense<0.000000e+00> : vector<8x128xf32>
    %192 = tpu.matmul %189, %191, %cst_146 {dimension_numbers = #tpu.dot_dimension_numbers<[1], [0], [0], [1], [0, 0, 1, 1], [], []>} : vector<8x16xbf16>, vector<16x128xbf16>, vector<8x128xf32> -> vector<8x128xf32>
    %193 = arith.addf %184, %192 : vector<8x128xf32>
    %194 = vector.broadcast %0 : vector<1x128xf32> to vector<8x128xf32>
    %195 = arith.mulf %193, %194 : vector<8x128xf32>
    %196 = vector.broadcast %1 : vector<1x128xf32> to vector<8x128xf32>
    %197 = arith.addf %195, %196 : vector<8x128xf32>
    %cst_147 = arith.constant 0.000000e+00 : f32
    %198 = vector.broadcast %cst_147 : f32 to vector<8x128xf32>
    %199 = arith.cmpf oge, %197, %198 : vector<8x128xf32>
    %cst_148 = arith.constant 2.000000e-01 : f32
    %200 = vector.broadcast %cst_148 : f32 to vector<8x128xf32>
    %201 = arith.mulf %200, %197 : vector<8x128xf32>
    %202 = arith.select %199, %197, %201 : vector<8x128xi1>, vector<8x128xf32>
    %c0_149 = arith.constant 0 : index
    %c24 = arith.constant 24 : index
    %c0_150 = arith.constant 0 : index
    %203 = vector.load %arg6[%c0_149, %c24, %c0_150] : memref<1x64x128xf32, #tpu.memory_space<vmem>>, vector<1x8x128xf32>
    %204 = vector.shape_cast %203 : vector<1x8x128xf32> to vector<8x128xf32>
    %205 = vector.shape_cast %202 : vector<8x128xf32> to vector<1x8x128xf32>
    tpu.vector_store %arg6[%c0_149, %c24, %c0_150], %205 {strides = array<i32>} : memref<1x64x128xf32, #tpu.memory_space<vmem>>, vector<1x8x128xf32>,
    %c8_i32_151 = arith.constant 8 : i32
    %206 = arith.muli %arg1, %c8_i32_151 : i32
    %c4_i32 = arith.constant 4 : i32
    %207 = arith.addi %206, %c4_i32 : i32
    %cst_152 = arith.constant 0.000000e+00 : f32
    %208 = vector.broadcast %cst_152 : f32 to vector<8x128xf32>
    %c0_i32_153 = arith.constant 0 : i32
    %209 = arith.addi %207, %c0_i32_153 : i32
    %c0_154 = arith.constant 0 : index
    %210 = arith.index_cast %209 : i32 to index
    %c0_155 = arith.constant 0 : index
    %c0_156 = arith.constant 0 : index
    %211 = vector.load %arg2[%c0_154, %210, %c0_155, %c0_156] : memref<1x9x9x16xbf16, #tpu.memory_space<vmem>>, vector<1x1x8x16xbf16>
    %212 = vector.shape_cast %211 : vector<1x1x8x16xbf16> to vector<1x8x16xbf16>
    %213 = vector.shape_cast %212 : vector<1x8x16xbf16> to vector<8x16xbf16>
    %c0_157 = arith.constant 0 : index
    %c0_158 = arith.constant 0 : index
    %c0_159 = arith.constant 0 : index
    %214 = vector.load %arg3[%c0_157, %c0_158, %c0_159] : memref<4x16x128xbf16, #tpu.memory_space<vmem>>, vector<1x16x128xbf16>
    %215 = vector.shape_cast %214 : vector<1x16x128xbf16> to vector<16x128xbf16>
    %cst_160 = arith.constant dense<0.000000e+00> : vector<8x128xf32>
    %216 = tpu.matmul %213, %215, %cst_160 {dimension_numbers = #tpu.dot_dimension_numbers<[1], [0], [0], [1], [0, 0, 1, 1], [], []>} : vector<8x16xbf16>, vector<16x128xbf16>, vector<8x128xf32> -> vector<8x128xf32>
    %217 = arith.addf %208, %216 : vector<8x128xf32>
    %c0_i32_161 = arith.constant 0 : i32
    %218 = arith.addi %207, %c0_i32_161 : i32
    %c0_162 = arith.constant 0 : index
    %219 = arith.index_cast %218 : i32 to index
    %c1_163 = arith.constant 1 : index
    %c0_164 = arith.constant 0 : index
    %220 = vector.load %arg2[%c0_162, %219, %c1_163, %c0_164] : memref<1x9x9x16xbf16, #tpu.memory_space<vmem>>, vector<1x1x8x16xbf16>
    %221 = vector.shape_cast %220 : vector<1x1x8x16xbf16> to vector<1x8x16xbf16>
    %222 = vector.shape_cast %221 : vector<1x8x16xbf16> to vector<8x16xbf16>
    %c1_165 = arith.constant 1 : index
    %c0_166 = arith.constant 0 : index
    %c0_167 = arith.constant 0 : index
    %223 = vector.load %arg3[%c1_165, %c0_166, %c0_167] : memref<4x16x128xbf16, #tpu.memory_space<vmem>>, vector<1x16x128xbf16>
    %224 = vector.shape_cast %223 : vector<1x16x128xbf16> to vector<16x128xbf16>
    %cst_168 = arith.constant dense<0.000000e+00> : vector<8x128xf32>
    %225 = tpu.matmul %222, %224, %cst_168 {dimension_numbers = #tpu.dot_dimension_numbers<[1], [0], [0], [1], [0, 0, 1, 1], [], []>} : vector<8x16xbf16>, vector<16x128xbf16>, vector<8x128xf32> -> vector<8x128xf32>
    %226 = arith.addf %217, %225 : vector<8x128xf32>
    %c1_i32_169 = arith.constant 1 : i32
    %227 = arith.addi %207, %c1_i32_169 : i32
    %c0_170 = arith.constant 0 : index
    %228 = arith.index_cast %227 : i32 to index
    %c0_171 = arith.constant 0 : index
    %c0_172 = arith.constant 0 : index
    %229 = vector.load %arg2[%c0_170, %228, %c0_171, %c0_172] : memref<1x9x9x16xbf16, #tpu.memory_space<vmem>>, vector<1x1x8x16xbf16>
    %230 = vector.shape_cast %229 : vector<1x1x8x16xbf16> to vector<1x8x16xbf16>
    %231 = vector.shape_cast %230 : vector<1x8x16xbf16> to vector<8x16xbf16>
    %c2_173 = arith.constant 2 : index
    %c0_174 = arith.constant 0 : index
    %c0_175 = arith.constant 0 : index
    %232 = vector.load %arg3[%c2_173, %c0_174, %c0_175] : memref<4x16x128xbf16, #tpu.memory_space<vmem>>, vector<1x16x128xbf16>
    %233 = vector.shape_cast %232 : vector<1x16x128xbf16> to vector<16x128xbf16>
    %cst_176 = arith.constant dense<0.000000e+00> : vector<8x128xf32>
    %234 = tpu.matmul %231, %233, %cst_176 {dimension_numbers = #tpu.dot_dimension_numbers<[1], [0], [0], [1], [0, 0, 1, 1], [], []>} : vector<8x16xbf16>, vector<16x128xbf16>, vector<8x128xf32> -> vector<8x128xf32>
    %235 = arith.addf %226, %234 : vector<8x128xf32>
    %c1_i32_177 = arith.constant 1 : i32
    %236 = arith.addi %207, %c1_i32_177 : i32
    %c0_178 = arith.constant 0 : index
    %237 = arith.index_cast %236 : i32 to index
    %c1_179 = arith.constant 1 : index
    %c0_180 = arith.constant 0 : index
    %238 = vector.load %arg2[%c0_178, %237, %c1_179, %c0_180] : memref<1x9x9x16xbf16, #tpu.memory_space<vmem>>, vector<1x1x8x16xbf16>
    %239 = vector.shape_cast %238 : vector<1x1x8x16xbf16> to vector<1x8x16xbf16>
    %240 = vector.shape_cast %239 : vector<1x8x16xbf16> to vector<8x16xbf16>
    %c3_181 = arith.constant 3 : index
    %c0_182 = arith.constant 0 : index
    %c0_183 = arith.constant 0 : index
    %241 = vector.load %arg3[%c3_181, %c0_182, %c0_183] : memref<4x16x128xbf16, #tpu.memory_space<vmem>>, vector<1x16x128xbf16>
    %242 = vector.shape_cast %241 : vector<1x16x128xbf16> to vector<16x128xbf16>
    %cst_184 = arith.constant dense<0.000000e+00> : vector<8x128xf32>
    %243 = tpu.matmul %240, %242, %cst_184 {dimension_numbers = #tpu.dot_dimension_numbers<[1], [0], [0], [1], [0, 0, 1, 1], [], []>} : vector<8x16xbf16>, vector<16x128xbf16>, vector<8x128xf32> -> vector<8x128xf32>
    %244 = arith.addf %235, %243 : vector<8x128xf32>
    %245 = vector.broadcast %0 : vector<1x128xf32> to vector<8x128xf32>
    %246 = arith.mulf %244, %245 : vector<8x128xf32>
    %247 = vector.broadcast %1 : vector<1x128xf32> to vector<8x128xf32>
    %248 = arith.addf %246, %247 : vector<8x128xf32>
    %cst_185 = arith.constant 0.000000e+00 : f32
    %249 = vector.broadcast %cst_185 : f32 to vector<8x128xf32>
    %250 = arith.cmpf oge, %248, %249 : vector<8x128xf32>
    %cst_186 = arith.constant 2.000000e-01 : f32
    %251 = vector.broadcast %cst_186 : f32 to vector<8x128xf32>
    %252 = arith.mulf %251, %248 : vector<8x128xf32>
    %253 = arith.select %250, %248, %252 : vector<8x128xi1>, vector<8x128xf32>
    %c0_187 = arith.constant 0 : index
    %c32 = arith.constant 32 : index
    %c0_188 = arith.constant 0 : index
    %254 = vector.load %arg6[%c0_187, %c32, %c0_188] : memref<1x64x128xf32, #tpu.memory_space<vmem>>, vector<1x8x128xf32>
    %255 = vector.shape_cast %254 : vector<1x8x128xf32> to vector<8x128xf32>
    %256 = vector.shape_cast %253 : vector<8x128xf32> to vector<1x8x128xf32>
    tpu.vector_store %arg6[%c0_187, %c32, %c0_188], %256 {strides = array<i32>} : memref<1x64x128xf32, #tpu.memory_space<vmem>>, vector<1x8x128xf32>,
    %c8_i32_189 = arith.constant 8 : i32
    %257 = arith.muli %arg1, %c8_i32_189 : i32
    %c5_i32 = arith.constant 5 : i32
    %258 = arith.addi %257, %c5_i32 : i32
    %cst_190 = arith.constant 0.000000e+00 : f32
    %259 = vector.broadcast %cst_190 : f32 to vector<8x128xf32>
    %c0_i32_191 = arith.constant 0 : i32
    %260 = arith.addi %258, %c0_i32_191 : i32
    %c0_192 = arith.constant 0 : index
    %261 = arith.index_cast %260 : i32 to index
    %c0_193 = arith.constant 0 : index
    %c0_194 = arith.constant 0 : index
    %262 = vector.load %arg2[%c0_192, %261, %c0_193, %c0_194] : memref<1x9x9x16xbf16, #tpu.memory_space<vmem>>, vector<1x1x8x16xbf16>
    %263 = vector.shape_cast %262 : vector<1x1x8x16xbf16> to vector<1x8x16xbf16>
    %264 = vector.shape_cast %263 : vector<1x8x16xbf16> to vector<8x16xbf16>
    %c0_195 = arith.constant 0 : index
    %c0_196 = arith.constant 0 : index
    %c0_197 = arith.constant 0 : index
    %265 = vector.load %arg3[%c0_195, %c0_196, %c0_197] : memref<4x16x128xbf16, #tpu.memory_space<vmem>>, vector<1x16x128xbf16>
    %266 = vector.shape_cast %265 : vector<1x16x128xbf16> to vector<16x128xbf16>
    %cst_198 = arith.constant dense<0.000000e+00> : vector<8x128xf32>
    %267 = tpu.matmul %264, %266, %cst_198 {dimension_numbers = #tpu.dot_dimension_numbers<[1], [0], [0], [1], [0, 0, 1, 1], [], []>} : vector<8x16xbf16>, vector<16x128xbf16>, vector<8x128xf32> -> vector<8x128xf32>
    %268 = arith.addf %259, %267 : vector<8x128xf32>
    %c0_i32_199 = arith.constant 0 : i32
    %269 = arith.addi %258, %c0_i32_199 : i32
    %c0_200 = arith.constant 0 : index
    %270 = arith.index_cast %269 : i32 to index
    %c1_201 = arith.constant 1 : index
    %c0_202 = arith.constant 0 : index
    %271 = vector.load %arg2[%c0_200, %270, %c1_201, %c0_202] : memref<1x9x9x16xbf16, #tpu.memory_space<vmem>>, vector<1x1x8x16xbf16>
    %272 = vector.shape_cast %271 : vector<1x1x8x16xbf16> to vector<1x8x16xbf16>
    %273 = vector.shape_cast %272 : vector<1x8x16xbf16> to vector<8x16xbf16>
    %c1_203 = arith.constant 1 : index
    %c0_204 = arith.constant 0 : index
    %c0_205 = arith.constant 0 : index
    %274 = vector.load %arg3[%c1_203, %c0_204, %c0_205] : memref<4x16x128xbf16, #tpu.memory_space<vmem>>, vector<1x16x128xbf16>
    %275 = vector.shape_cast %274 : vector<1x16x128xbf16> to vector<16x128xbf16>
    %cst_206 = arith.constant dense<0.000000e+00> : vector<8x128xf32>
    %276 = tpu.matmul %273, %275, %cst_206 {dimension_numbers = #tpu.dot_dimension_numbers<[1], [0], [0], [1], [0, 0, 1, 1], [], []>} : vector<8x16xbf16>, vector<16x128xbf16>, vector<8x128xf32> -> vector<8x128xf32>
    %277 = arith.addf %268, %276 : vector<8x128xf32>
    %c1_i32_207 = arith.constant 1 : i32
    %278 = arith.addi %258, %c1_i32_207 : i32
    %c0_208 = arith.constant 0 : index
    %279 = arith.index_cast %278 : i32 to index
    %c0_209 = arith.constant 0 : index
    %c0_210 = arith.constant 0 : index
    %280 = vector.load %arg2[%c0_208, %279, %c0_209, %c0_210] : memref<1x9x9x16xbf16, #tpu.memory_space<vmem>>, vector<1x1x8x16xbf16>
    %281 = vector.shape_cast %280 : vector<1x1x8x16xbf16> to vector<1x8x16xbf16>
    %282 = vector.shape_cast %281 : vector<1x8x16xbf16> to vector<8x16xbf16>
    %c2_211 = arith.constant 2 : index
    %c0_212 = arith.constant 0 : index
    %c0_213 = arith.constant 0 : index
    %283 = vector.load %arg3[%c2_211, %c0_212, %c0_213] : memref<4x16x128xbf16, #tpu.memory_space<vmem>>, vector<1x16x128xbf16>
    %284 = vector.shape_cast %283 : vector<1x16x128xbf16> to vector<16x128xbf16>
    %cst_214 = arith.constant dense<0.000000e+00> : vector<8x128xf32>
    %285 = tpu.matmul %282, %284, %cst_214 {dimension_numbers = #tpu.dot_dimension_numbers<[1], [0], [0], [1], [0, 0, 1, 1], [], []>} : vector<8x16xbf16>, vector<16x128xbf16>, vector<8x128xf32> -> vector<8x128xf32>
    %286 = arith.addf %277, %285 : vector<8x128xf32>
    %c1_i32_215 = arith.constant 1 : i32
    %287 = arith.addi %258, %c1_i32_215 : i32
    %c0_216 = arith.constant 0 : index
    %288 = arith.index_cast %287 : i32 to index
    %c1_217 = arith.constant 1 : index
    %c0_218 = arith.constant 0 : index
    %289 = vector.load %arg2[%c0_216, %288, %c1_217, %c0_218] : memref<1x9x9x16xbf16, #tpu.memory_space<vmem>>, vector<1x1x8x16xbf16>
    %290 = vector.shape_cast %289 : vector<1x1x8x16xbf16> to vector<1x8x16xbf16>
    %291 = vector.shape_cast %290 : vector<1x8x16xbf16> to vector<8x16xbf16>
    %c3_219 = arith.constant 3 : index
    %c0_220 = arith.constant 0 : index
    %c0_221 = arith.constant 0 : index
    %292 = vector.load %arg3[%c3_219, %c0_220, %c0_221] : memref<4x16x128xbf16, #tpu.memory_space<vmem>>, vector<1x16x128xbf16>
    %293 = vector.shape_cast %292 : vector<1x16x128xbf16> to vector<16x128xbf16>
    %cst_222 = arith.constant dense<0.000000e+00> : vector<8x128xf32>
    %294 = tpu.matmul %291, %293, %cst_222 {dimension_numbers = #tpu.dot_dimension_numbers<[1], [0], [0], [1], [0, 0, 1, 1], [], []>} : vector<8x16xbf16>, vector<16x128xbf16>, vector<8x128xf32> -> vector<8x128xf32>
    %295 = arith.addf %286, %294 : vector<8x128xf32>
    %296 = vector.broadcast %0 : vector<1x128xf32> to vector<8x128xf32>
    %297 = arith.mulf %295, %296 : vector<8x128xf32>
    %298 = vector.broadcast %1 : vector<1x128xf32> to vector<8x128xf32>
    %299 = arith.addf %297, %298 : vector<8x128xf32>
    %cst_223 = arith.constant 0.000000e+00 : f32
    %300 = vector.broadcast %cst_223 : f32 to vector<8x128xf32>
    %301 = arith.cmpf oge, %299, %300 : vector<8x128xf32>
    %cst_224 = arith.constant 2.000000e-01 : f32
    %302 = vector.broadcast %cst_224 : f32 to vector<8x128xf32>
    %303 = arith.mulf %302, %299 : vector<8x128xf32>
    %304 = arith.select %301, %299, %303 : vector<8x128xi1>, vector<8x128xf32>
    %c0_225 = arith.constant 0 : index
    %c40 = arith.constant 40 : index
    %c0_226 = arith.constant 0 : index
    %305 = vector.load %arg6[%c0_225, %c40, %c0_226] : memref<1x64x128xf32, #tpu.memory_space<vmem>>, vector<1x8x128xf32>
    %306 = vector.shape_cast %305 : vector<1x8x128xf32> to vector<8x128xf32>
    %307 = vector.shape_cast %304 : vector<8x128xf32> to vector<1x8x128xf32>
    tpu.vector_store %arg6[%c0_225, %c40, %c0_226], %307 {strides = array<i32>} : memref<1x64x128xf32, #tpu.memory_space<vmem>>, vector<1x8x128xf32>,
    %c8_i32_227 = arith.constant 8 : i32
    %308 = arith.muli %arg1, %c8_i32_227 : i32
    %c6_i32 = arith.constant 6 : i32
    %309 = arith.addi %308, %c6_i32 : i32
    %cst_228 = arith.constant 0.000000e+00 : f32
    %310 = vector.broadcast %cst_228 : f32 to vector<8x128xf32>
    %c0_i32_229 = arith.constant 0 : i32
    %311 = arith.addi %309, %c0_i32_229 : i32
    %c0_230 = arith.constant 0 : index
    %312 = arith.index_cast %311 : i32 to index
    %c0_231 = arith.constant 0 : index
    %c0_232 = arith.constant 0 : index
    %313 = vector.load %arg2[%c0_230, %312, %c0_231, %c0_232] : memref<1x9x9x16xbf16, #tpu.memory_space<vmem>>, vector<1x1x8x16xbf16>
    %314 = vector.shape_cast %313 : vector<1x1x8x16xbf16> to vector<1x8x16xbf16>
    %315 = vector.shape_cast %314 : vector<1x8x16xbf16> to vector<8x16xbf16>
    %c0_233 = arith.constant 0 : index
    %c0_234 = arith.constant 0 : index
    %c0_235 = arith.constant 0 : index
    %316 = vector.load %arg3[%c0_233, %c0_234, %c0_235] : memref<4x16x128xbf16, #tpu.memory_space<vmem>>, vector<1x16x128xbf16>
    %317 = vector.shape_cast %316 : vector<1x16x128xbf16> to vector<16x128xbf16>
    %cst_236 = arith.constant dense<0.000000e+00> : vector<8x128xf32>
    %318 = tpu.matmul %315, %317, %cst_236 {dimension_numbers = #tpu.dot_dimension_numbers<[1], [0], [0], [1], [0, 0, 1, 1], [], []>} : vector<8x16xbf16>, vector<16x128xbf16>, vector<8x128xf32> -> vector<8x128xf32>
    %319 = arith.addf %310, %318 : vector<8x128xf32>
    %c0_i32_237 = arith.constant 0 : i32
    %320 = arith.addi %309, %c0_i32_237 : i32
    %c0_238 = arith.constant 0 : index
    %321 = arith.index_cast %320 : i32 to index
    %c1_239 = arith.constant 1 : index
    %c0_240 = arith.constant 0 : index
    %322 = vector.load %arg2[%c0_238, %321, %c1_239, %c0_240] : memref<1x9x9x16xbf16, #tpu.memory_space<vmem>>, vector<1x1x8x16xbf16>
    %323 = vector.shape_cast %322 : vector<1x1x8x16xbf16> to vector<1x8x16xbf16>
    %324 = vector.shape_cast %323 : vector<1x8x16xbf16> to vector<8x16xbf16>
    %c1_241 = arith.constant 1 : index
    %c0_242 = arith.constant 0 : index
    %c0_243 = arith.constant 0 : index
    %325 = vector.load %arg3[%c1_241, %c0_242, %c0_243] : memref<4x16x128xbf16, #tpu.memory_space<vmem>>, vector<1x16x128xbf16>
    %326 = vector.shape_cast %325 : vector<1x16x128xbf16> to vector<16x128xbf16>
    %cst_244 = arith.constant dense<0.000000e+00> : vector<8x128xf32>
    %327 = tpu.matmul %324, %326, %cst_244 {dimension_numbers = #tpu.dot_dimension_numbers<[1], [0], [0], [1], [0, 0, 1, 1], [], []>} : vector<8x16xbf16>, vector<16x128xbf16>, vector<8x128xf32> -> vector<8x128xf32>
    %328 = arith.addf %319, %327 : vector<8x128xf32>
    %c1_i32_245 = arith.constant 1 : i32
    %329 = arith.addi %309, %c1_i32_245 : i32
    %c0_246 = arith.constant 0 : index
    %330 = arith.index_cast %329 : i32 to index
    %c0_247 = arith.constant 0 : index
    %c0_248 = arith.constant 0 : index
    %331 = vector.load %arg2[%c0_246, %330, %c0_247, %c0_248] : memref<1x9x9x16xbf16, #tpu.memory_space<vmem>>, vector<1x1x8x16xbf16>
    %332 = vector.shape_cast %331 : vector<1x1x8x16xbf16> to vector<1x8x16xbf16>
    %333 = vector.shape_cast %332 : vector<1x8x16xbf16> to vector<8x16xbf16>
    %c2_249 = arith.constant 2 : index
    %c0_250 = arith.constant 0 : index
    %c0_251 = arith.constant 0 : index
    %334 = vector.load %arg3[%c2_249, %c0_250, %c0_251] : memref<4x16x128xbf16, #tpu.memory_space<vmem>>, vector<1x16x128xbf16>
    %335 = vector.shape_cast %334 : vector<1x16x128xbf16> to vector<16x128xbf16>
    %cst_252 = arith.constant dense<0.000000e+00> : vector<8x128xf32>
    %336 = tpu.matmul %333, %335, %cst_252 {dimension_numbers = #tpu.dot_dimension_numbers<[1], [0], [0], [1], [0, 0, 1, 1], [], []>} : vector<8x16xbf16>, vector<16x128xbf16>, vector<8x128xf32> -> vector<8x128xf32>
    %337 = arith.addf %328, %336 : vector<8x128xf32>
    %c1_i32_253 = arith.constant 1 : i32
    %338 = arith.addi %309, %c1_i32_253 : i32
    %c0_254 = arith.constant 0 : index
    %339 = arith.index_cast %338 : i32 to index
    %c1_255 = arith.constant 1 : index
    %c0_256 = arith.constant 0 : index
    %340 = vector.load %arg2[%c0_254, %339, %c1_255, %c0_256] : memref<1x9x9x16xbf16, #tpu.memory_space<vmem>>, vector<1x1x8x16xbf16>
    %341 = vector.shape_cast %340 : vector<1x1x8x16xbf16> to vector<1x8x16xbf16>
    %342 = vector.shape_cast %341 : vector<1x8x16xbf16> to vector<8x16xbf16>
    %c3_257 = arith.constant 3 : index
    %c0_258 = arith.constant 0 : index
    %c0_259 = arith.constant 0 : index
    %343 = vector.load %arg3[%c3_257, %c0_258, %c0_259] : memref<4x16x128xbf16, #tpu.memory_space<vmem>>, vector<1x16x128xbf16>
    %344 = vector.shape_cast %343 : vector<1x16x128xbf16> to vector<16x128xbf16>
    %cst_260 = arith.constant dense<0.000000e+00> : vector<8x128xf32>
    %345 = tpu.matmul %342, %344, %cst_260 {dimension_numbers = #tpu.dot_dimension_numbers<[1], [0], [0], [1], [0, 0, 1, 1], [], []>} : vector<8x16xbf16>, vector<16x128xbf16>, vector<8x128xf32> -> vector<8x128xf32>
    %346 = arith.addf %337, %345 : vector<8x128xf32>
    %347 = vector.broadcast %0 : vector<1x128xf32> to vector<8x128xf32>
    %348 = arith.mulf %346, %347 : vector<8x128xf32>
    %349 = vector.broadcast %1 : vector<1x128xf32> to vector<8x128xf32>
    %350 = arith.addf %348, %349 : vector<8x128xf32>
    %cst_261 = arith.constant 0.000000e+00 : f32
    %351 = vector.broadcast %cst_261 : f32 to vector<8x128xf32>
    %352 = arith.cmpf oge, %350, %351 : vector<8x128xf32>
    %cst_262 = arith.constant 2.000000e-01 : f32
    %353 = vector.broadcast %cst_262 : f32 to vector<8x128xf32>
    %354 = arith.mulf %353, %350 : vector<8x128xf32>
    %355 = arith.select %352, %350, %354 : vector<8x128xi1>, vector<8x128xf32>
    %c0_263 = arith.constant 0 : index
    %c48 = arith.constant 48 : index
    %c0_264 = arith.constant 0 : index
    %356 = vector.load %arg6[%c0_263, %c48, %c0_264] : memref<1x64x128xf32, #tpu.memory_space<vmem>>, vector<1x8x128xf32>
    %357 = vector.shape_cast %356 : vector<1x8x128xf32> to vector<8x128xf32>
    %358 = vector.shape_cast %355 : vector<8x128xf32> to vector<1x8x128xf32>
    tpu.vector_store %arg6[%c0_263, %c48, %c0_264], %358 {strides = array<i32>} : memref<1x64x128xf32, #tpu.memory_space<vmem>>, vector<1x8x128xf32>,
    %c8_i32_265 = arith.constant 8 : i32
    %359 = arith.muli %arg1, %c8_i32_265 : i32
    %c7_i32 = arith.constant 7 : i32
    %360 = arith.addi %359, %c7_i32 : i32
    %cst_266 = arith.constant 0.000000e+00 : f32
    %361 = vector.broadcast %cst_266 : f32 to vector<8x128xf32>
    %c0_i32_267 = arith.constant 0 : i32
    %362 = arith.addi %360, %c0_i32_267 : i32
    %c0_268 = arith.constant 0 : index
    %363 = arith.index_cast %362 : i32 to index
    %c0_269 = arith.constant 0 : index
    %c0_270 = arith.constant 0 : index
    %364 = vector.load %arg2[%c0_268, %363, %c0_269, %c0_270] : memref<1x9x9x16xbf16, #tpu.memory_space<vmem>>, vector<1x1x8x16xbf16>
    %365 = vector.shape_cast %364 : vector<1x1x8x16xbf16> to vector<1x8x16xbf16>
    %366 = vector.shape_cast %365 : vector<1x8x16xbf16> to vector<8x16xbf16>
    %c0_271 = arith.constant 0 : index
    %c0_272 = arith.constant 0 : index
    %c0_273 = arith.constant 0 : index
    %367 = vector.load %arg3[%c0_271, %c0_272, %c0_273] : memref<4x16x128xbf16, #tpu.memory_space<vmem>>, vector<1x16x128xbf16>
    %368 = vector.shape_cast %367 : vector<1x16x128xbf16> to vector<16x128xbf16>
    %cst_274 = arith.constant dense<0.000000e+00> : vector<8x128xf32>
    %369 = tpu.matmul %366, %368, %cst_274 {dimension_numbers = #tpu.dot_dimension_numbers<[1], [0], [0], [1], [0, 0, 1, 1], [], []>} : vector<8x16xbf16>, vector<16x128xbf16>, vector<8x128xf32> -> vector<8x128xf32>
    %370 = arith.addf %361, %369 : vector<8x128xf32>
    %c0_i32_275 = arith.constant 0 : i32
    %371 = arith.addi %360, %c0_i32_275 : i32
    %c0_276 = arith.constant 0 : index
    %372 = arith.index_cast %371 : i32 to index
    %c1_277 = arith.constant 1 : index
    %c0_278 = arith.constant 0 : index
    %373 = vector.load %arg2[%c0_276, %372, %c1_277, %c0_278] : memref<1x9x9x16xbf16, #tpu.memory_space<vmem>>, vector<1x1x8x16xbf16>
    %374 = vector.shape_cast %373 : vector<1x1x8x16xbf16> to vector<1x8x16xbf16>
    %375 = vector.shape_cast %374 : vector<1x8x16xbf16> to vector<8x16xbf16>
    %c1_279 = arith.constant 1 : index
    %c0_280 = arith.constant 0 : index
    %c0_281 = arith.constant 0 : index
    %376 = vector.load %arg3[%c1_279, %c0_280, %c0_281] : memref<4x16x128xbf16, #tpu.memory_space<vmem>>, vector<1x16x128xbf16>
    %377 = vector.shape_cast %376 : vector<1x16x128xbf16> to vector<16x128xbf16>
    %cst_282 = arith.constant dense<0.000000e+00> : vector<8x128xf32>
    %378 = tpu.matmul %375, %377, %cst_282 {dimension_numbers = #tpu.dot_dimension_numbers<[1], [0], [0], [1], [0, 0, 1, 1], [], []>} : vector<8x16xbf16>, vector<16x128xbf16>, vector<8x128xf32> -> vector<8x128xf32>
    %379 = arith.addf %370, %378 : vector<8x128xf32>
    %c1_i32_283 = arith.constant 1 : i32
    %380 = arith.addi %360, %c1_i32_283 : i32
    %c0_284 = arith.constant 0 : index
    %381 = arith.index_cast %380 : i32 to index
    %c0_285 = arith.constant 0 : index
    %c0_286 = arith.constant 0 : index
    %382 = vector.load %arg2[%c0_284, %381, %c0_285, %c0_286] : memref<1x9x9x16xbf16, #tpu.memory_space<vmem>>, vector<1x1x8x16xbf16>
    %383 = vector.shape_cast %382 : vector<1x1x8x16xbf16> to vector<1x8x16xbf16>
    %384 = vector.shape_cast %383 : vector<1x8x16xbf16> to vector<8x16xbf16>
    %c2_287 = arith.constant 2 : index
    %c0_288 = arith.constant 0 : index
    %c0_289 = arith.constant 0 : index
    %385 = vector.load %arg3[%c2_287, %c0_288, %c0_289] : memref<4x16x128xbf16, #tpu.memory_space<vmem>>, vector<1x16x128xbf16>
    %386 = vector.shape_cast %385 : vector<1x16x128xbf16> to vector<16x128xbf16>
    %cst_290 = arith.constant dense<0.000000e+00> : vector<8x128xf32>
    %387 = tpu.matmul %384, %386, %cst_290 {dimension_numbers = #tpu.dot_dimension_numbers<[1], [0], [0], [1], [0, 0, 1, 1], [], []>} : vector<8x16xbf16>, vector<16x128xbf16>, vector<8x128xf32> -> vector<8x128xf32>
    %388 = arith.addf %379, %387 : vector<8x128xf32>
    %c1_i32_291 = arith.constant 1 : i32
    %389 = arith.addi %360, %c1_i32_291 : i32
    %c0_292 = arith.constant 0 : index
    %390 = arith.index_cast %389 : i32 to index
    %c1_293 = arith.constant 1 : index
    %c0_294 = arith.constant 0 : index
    %391 = vector.load %arg2[%c0_292, %390, %c1_293, %c0_294] : memref<1x9x9x16xbf16, #tpu.memory_space<vmem>>, vector<1x1x8x16xbf16>
    %392 = vector.shape_cast %391 : vector<1x1x8x16xbf16> to vector<1x8x16xbf16>
    %393 = vector.shape_cast %392 : vector<1x8x16xbf16> to vector<8x16xbf16>
    %c3_295 = arith.constant 3 : index
    %c0_296 = arith.constant 0 : index
    %c0_297 = arith.constant 0 : index
    %394 = vector.load %arg3[%c3_295, %c0_296, %c0_297] : memref<4x16x128xbf16, #tpu.memory_space<vmem>>, vector<1x16x128xbf16>
    %395 = vector.shape_cast %394 : vector<1x16x128xbf16> to vector<16x128xbf16>
    %cst_298 = arith.constant dense<0.000000e+00> : vector<8x128xf32>
    %396 = tpu.matmul %393, %395, %cst_298 {dimension_numbers = #tpu.dot_dimension_numbers<[1], [0], [0], [1], [0, 0, 1, 1], [], []>} : vector<8x16xbf16>, vector<16x128xbf16>, vector<8x128xf32> -> vector<8x128xf32>
    %397 = arith.addf %388, %396 : vector<8x128xf32>
    %398 = vector.broadcast %0 : vector<1x128xf32> to vector<8x128xf32>
    %399 = arith.mulf %397, %398 : vector<8x128xf32>
    %400 = vector.broadcast %1 : vector<1x128xf32> to vector<8x128xf32>
    %401 = arith.addf %399, %400 : vector<8x128xf32>
    %cst_299 = arith.constant 0.000000e+00 : f32
    %402 = vector.broadcast %cst_299 : f32 to vector<8x128xf32>
    %403 = arith.cmpf oge, %401, %402 : vector<8x128xf32>
    %cst_300 = arith.constant 2.000000e-01 : f32
    %404 = vector.broadcast %cst_300 : f32 to vector<8x128xf32>
    %405 = arith.mulf %404, %401 : vector<8x128xf32>
    %406 = arith.select %403, %401, %405 : vector<8x128xi1>, vector<8x128xf32>
    %c0_301 = arith.constant 0 : index
    %c56 = arith.constant 56 : index
    %c0_302 = arith.constant 0 : index
    %407 = vector.load %arg6[%c0_301, %c56, %c0_302] : memref<1x64x128xf32, #tpu.memory_space<vmem>>, vector<1x8x128xf32>
    %408 = vector.shape_cast %407 : vector<1x8x128xf32> to vector<8x128xf32>
    %409 = vector.shape_cast %406 : vector<8x128xf32> to vector<1x8x128xf32>
    tpu.vector_store %arg6[%c0_301, %c56, %c0_302], %409 {strides = array<i32>} : memref<1x64x128xf32, #tpu.memory_space<vmem>>, vector<1x8x128xf32>,
    return
  }
  func.func @transform_0(%arg0: i32, %arg1: i32) -> (i32, i32, i32, i32) {
    %c0_i32 = arith.constant 0 : i32
    %c0_i32_0 = arith.constant 0 : i32
    %c0_i32_1 = arith.constant 0 : i32
    %c0_i32_2 = arith.constant 0 : i32
    return %arg0, %c0_i32, %c0_i32_0, %c0_i32_1 : i32, i32, i32, i32
  }
  func.func @transform_1(%arg0: i32, %arg1: i32) -> (i32, i32, i32) {
    %c0_i32 = arith.constant 0 : i32
    %c0_i32_0 = arith.constant 0 : i32
    %c0_i32_1 = arith.constant 0 : i32
    %c0_i32_2 = arith.constant 0 : i32
    return %c0_i32, %c0_i32_0, %c0_i32_1 : i32, i32, i32
  }
  func.func @transform_2(%arg0: i32, %arg1: i32) -> (i32, i32) {
    %c0_i32 = arith.constant 0 : i32
    %c0_i32_0 = arith.constant 0 : i32
    %c0_i32_1 = arith.constant 0 : i32
    return %c0_i32, %c0_i32_0 : i32, i32
  }
  func.func @transform_3(%arg0: i32, %arg1: i32) -> (i32, i32) {
    %c0_i32 = arith.constant 0 : i32
    %c0_i32_0 = arith.constant 0 : i32
    %c0_i32_1 = arith.constant 0 : i32
    return %c0_i32, %c0_i32_0 : i32, i32
  }
  func.func @transform_4(%arg0: i32, %arg1: i32) -> (i32, i32, i32) {
    %c0_i32 = arith.constant 0 : i32
    %c0_i32_0 = arith.constant 0 : i32
    return %arg0, %arg1, %c0_i32 : i32, i32, i32
  }
}

</mosaic_0001>

<llo_original>
// kernel: tpu_custom_call.1
$region0: #{tpu_custom_call.1}
  #allocation0 [shape = 'u32[]', space=smem, size = 0x4, offset = 0x4, fixed_abs, tag = 'smem constant byte address 0x4 - core index']
  #allocation1 [shape = 'u32[144,128]{1,0:T(1,128)}', space=vmem, size = 0x12000, scoped, tag = 'internal scratch']
  %s0 = inlined_call_operand.hbm [shape: bf16[1,9,9,16], index: 0, kind: input, shape index: {}]
  %s1 = inlined_call_operand.hbm [shape: bf16[4,16,128], index: 1, kind: input, shape index: {}]
  %s2 = inlined_call_operand.vmem [shape: f32[1,128], index: 2, kind: input, shape index: {}]
  %s3 = inlined_call_operand.vmem [shape: f32[1,128], index: 3, kind: input, shape index: {}]
  %s4 = inlined_call_operand.hbm [shape: f32[1,64,128], index: 4, kind: output, shape index: {}]
  %s5 = sld [smem:[#allocation0]]
  $region34: #{tpu_custom_call.1} parent=0
    _
  %s7 = ssub.s32 1, %s5
  %s8 = scalar_select 0, %s7, %s5
  $region1: #{tpu_custom_call.1} parent=0
    #allocation2 [shape = 'u8[36864]{0}', space=vmem, size = 0x9000, scoped, tag = 'input window, operand 0, single buffered']
    #allocation3 [shape = 's32[1]{0}', space=sflag, size = 0x4, scoped, tag = 'scoped memory for tpu_custom_call.1']
    #allocation4 [shape = 's32[1]{0}', space=sflag, size = 0x4, scoped, tag = 'scoped memory for tpu_custom_call.1']
    #allocation5 [shape = 'u8[16384]{0}', space=vmem, size = 0x4000, scoped, tag = 'input window, operand 1, single buffered']
    #allocation6 [shape = 's32[1]{0}', space=sflag, size = 0x4, scoped, tag = 'scoped memory for tpu_custom_call.1']
    #allocation7 [shape = 'u8[32768]{0}', space=vmem, size = 0x8000, scoped, tag = 'output window, operand 0, single buffered']
    %9 = vsyncpa [#allocation3], 0
    %10 = vsyncpa [#allocation6], 0
    %11 = vsyncpa [#allocation4], 0
    // Predicated region
    $region2: #{tpu_custom_call.1} parent=1 // pred_check
      _
    $region3: #{tpu_custom_call.1} parent=1 // pred_check_branch
      %13 = sbr.rel (0) target = $region5
    $region4: #{tpu_custom_call.1} parent=1 // pred_region
      %s15 = ssub.s32 1152, 1152
      %16 = vsyncadd [#allocation3], %s15
      %s17 = sshll.u32 [#allocation2], 4
      %s18 = int_to_ptr.vmem [resolvable:$true] %s17
      %23 = dma.hbm_to_vmem [thread:$0]  %s0, 1152, %s18, [#allocation3], 64, 64, 4
    $region5: #{tpu_custom_call.1} parent=1 // pred_fallthru
      _
    // Predicated region
    $region6: #{tpu_custom_call.1} parent=1 // pred_check
      _
    $region7: #{tpu_custom_call.1} parent=1 // pred_check_branch
      %25 = sbr.rel (0) target = $region9
    $region8: #{tpu_custom_call.1} parent=1 // pred_region
      %s27 = ssub.s32 512, 512
      %28 = vsyncadd [#allocation6], %s27
      %s29 = sshll.u32 [#allocation5], 4
      %s30 = int_to_ptr.vmem [resolvable:$true] %s29
      %35 = dma.hbm_to_vmem [thread:$0]  %s1, 512, %s30, [#allocation6], 64, 64, 4
    $region9: #{tpu_custom_call.1} parent=1 // pred_fallthru
      _
    // Predicated region
    $region10: #{tpu_custom_call.1} parent=1 // pred_check
      _
    $region11: #{tpu_custom_call.1} parent=1 // pred_check_branch
      %37 = sbr.rel (0) target = $region13
    $region12: #{tpu_custom_call.1} parent=1 // pred_region
      _
    $region13: #{tpu_custom_call.1} parent=1 // pred_fallthru
      _
    // Predicated region
    $region14: #{tpu_custom_call.1} parent=1 // pred_check
      _
    $region15: #{tpu_custom_call.1} parent=1 // pred_check_branch
      %39 = sbr.rel (0) target = $region17
    $region16: #{tpu_custom_call.1} parent=1 // pred_region
      _
    $region17: #{tpu_custom_call.1} parent=1 // pred_fallthru
      _
    // Predicated region
    $region18: #{tpu_custom_call.1} parent=1 // pred_check
      _
    $region19: #{tpu_custom_call.1} parent=1 // pred_check_branch
      %41 = sbr.rel (0) target = $region21
    $region20: #{tpu_custom_call.1} parent=1 // pred_region
      %42 = dma.done [#allocation3], 1152
    $region21: #{tpu_custom_call.1} parent=1 // pred_fallthru
      _
    // Predicated region
    $region22: #{tpu_custom_call.1} parent=1 // pred_check
      _
    $region23: #{tpu_custom_call.1} parent=1 // pred_check_branch
      %44 = sbr.rel (0) target = $region25
    $region24: #{tpu_custom_call.1} parent=1 // pred_region
      %45 = dma.done [#allocation6], 512
    $region25: #{tpu_custom_call.1} parent=1 // pred_fallthru
      _
    %v47 = vld [vmem:[%s2] sm:$0x1]
    %v48 = vld [vmem:[%s3] sm:$0x1]
    %s49 = smul.u32 0, 8
    %s50 = smul.u32 %s49, 2
    %s51 = smul.addr %s50, 4
    %s52 = scalar_lea.vmem [#allocation2], %s51
    %v53 = vld [vmem:[%s52] sm:$0xf]
    %v54 = vld [vmem:[#allocation5] sm:$0xf]
    %v55 = vld [vmem:[#allocation5 + $0x4] sm:$0xf]
    %v56 = vld [vmem:[%s52 + $0x4] sm:$0x1]
    %s57 = scalar_lea.vmem [#allocation5], 8
    %v58 = vld [vmem:[%s57] sm:$0xf]
    %v59 = vld [vmem:[%s57 + $0x4] sm:$0xf]
    %v62 = vunpack.c.l.b16 %v53
    %v63 = vunpack.c.l.b16 %v56
    %v64 = vpack.c.b16 %v63, %v62
    %v66 = vshrl.u32 %v64, 16
    %v68 = vshll.u32 %v64, 16
    %v70 = vrot.slane %v68, 1
    %v71 = vor.u32 %v66, %v70
    %v74 = vunpack.c.l.b16 %v58
    %v75 = vunpack.c.l.b16 %v59
    %v76 = vpack.c.b16 %v75, %v74
    %vm78 = vcmask 130048
    %v80 = vsel %vm78, %v71, 0
    %82 = vmatprep.subr.bf16.mxu0 0
    %83 = vmatpush1.bf16.msra.mxu0 0
    %84 = vmatprep.subr.bf16.mxu0 0
    %85 = vmatpush1.bf16.msra.mxu0 0
    %86 = vmatprep.subr.bf16.mxu0 0
    %87 = vmatpush1.bf16.msra.mxu0 0
    %88 = vmatprep.subr.bf16.mxu0 0
    %89 = vmatpush1.bf16.msra.mxu0 0
    %90 = vmatprep.subr.bf16.mxu0 0
    %91 = vmatpush1.bf16.msra.mxu0 0
    %92 = vmatprep.subr.bf16.mxu0 0
    %93 = vmatpush1.bf16.msra.mxu0 0
    %94 = vmatprep.subr.bf16.mxu0 0
    %95 = vmatpush1.bf16.msra.mxu0 0
    %96 = vmatprep.subr.bf16.mxu0 0
    %97 = vmatpush1.bf16.msra.mxu0 %v76
    %98 = vmatprep.subr.bf16.mxu0 0
    %99 = vmatpush2.bf16.msra.mxu0 0
    %100 = vmatprep.subr.bf16.mxu0 0
    %101 = vmatpush2.bf16.msra.mxu0 0
    %102 = vmatprep.subr.bf16.mxu0 0
    %103 = vmatpush2.bf16.msra.mxu0 0
    %104 = vmatprep.subr.bf16.mxu0 0
    %105 = vmatpush2.bf16.msra.mxu0 0
    %106 = vmatprep.subr.bf16.mxu0 0
    %107 = vmatpush2.bf16.msra.mxu0 0
    %108 = vmatprep.subr.bf16.mxu0 0
    %109 = vmatpush2.bf16.msra.mxu0 0
    %110 = vmatprep.subr.bf16.mxu0 0
    %111 = vmatpush2.bf16.msra.mxu0 0
    %112 = vmatprep.subr.bf16.mxu0 0
    %113 = vmatpush2.bf16.msra.mxu0 0
    %114 = vmatprep.mubr.bf16.mxu0 0
    %115 = vmatmul.mubr.bf16.gmra.mxu0 %v80
    %v116 = vpop.f32.mrf.mxu0
    %v117 = vadd.f32 0.0, %v116
    %v118 = vpop.f32.mrf.mxu0
    %v119 = vpop.f32.mrf.mxu0
    %v120 = vpop.f32.mrf.mxu0
    %121 = vdwg.mxu0
    %v124 = vunpack.c.l.b16 %v54
    %v125 = vunpack.c.l.b16 %v55
    %v126 = vpack.c.b16 %v125, %v124
    %v129 = vsel %vm78, %v53, 0
    %131 = vmatprep.subr.bf16.mxu0 0
    %132 = vmatpush1.bf16.msra.mxu0 0
    %133 = vmatprep.subr.bf16.mxu0 0
    %134 = vmatpush1.bf16.msra.mxu0 0
    %135 = vmatprep.subr.bf16.mxu0 0
    %136 = vmatpush1.bf16.msra.mxu0 0
    %137 = vmatprep.subr.bf16.mxu0 0
    %138 = vmatpush1.bf16.msra.mxu0 0
    %139 = vmatprep.subr.bf16.mxu0 0
    %140 = vmatpush1.bf16.msra.mxu0 0
    %141 = vmatprep.subr.bf16.mxu0 0
    %142 = vmatpush1.bf16.msra.mxu0 0
    %143 = vmatprep.subr.bf16.mxu0 0
    %144 = vmatpush1.bf16.msra.mxu0 0
    %145 = vmatprep.subr.bf16.mxu0 0
    %146 = vmatpush1.bf16.msra.mxu0 %v126
    %147 = vmatprep.subr.bf16.mxu0 0
    %148 = vmatpush2.bf16.msra.mxu0 0
    %149 = vmatprep.subr.bf16.mxu0 0
    %150 = vmatpush2.bf16.msra.mxu0 0
    %151 = vmatprep.subr.bf16.mxu0 0
    %152 = vmatpush2.bf16.msra.mxu0 0
    %153 = vmatprep.subr.bf16.mxu0 0
    %154 = vmatpush2.bf16.msra.mxu0 0
    %155 = vmatprep.subr.bf16.mxu0 0
    %156 = vmatpush2.bf16.msra.mxu0 0
    %157 = vmatprep.subr.bf16.mxu0 0
    %158 = vmatpush2.bf16.msra.mxu0 0
    %159 = vmatprep.subr.bf16.mxu0 0
    %160 = vmatpush2.bf16.msra.mxu0 0
    %161 = vmatprep.subr.bf16.mxu0 0
    %162 = vmatpush2.bf16.msra.mxu0 0
    %163 = vmatprep.mubr.bf16.mxu0 0
    %164 = vmatmul.mubr.bf16.gmra.mxu0 %v129
    %v165 = vpop.f32.mrf.mxu0
    %v166 = vadd.f32 %v117, %v165
    %v167 = vpop.f32.mrf.mxu0
    %v168 = vpop.f32.mrf.mxu0
    %v169 = vpop.f32.mrf.mxu0
    %170 = vdwg.mxu0
    %s171 = sadd.s32 %s49, 1
    %s172 = smul.u32 %s171, 2
    %s173 = smul.addr %s172, 4
    %s174 = scalar_lea.vmem [#allocation2], %s173
    %v175 = vld [vmem:[%s174] sm:$0xf]
    %s176 = scalar_lea.vmem [#allocation5], 16
    %v177 = vld [vmem:[%s176] sm:$0xf]
    %v178 = vld [vmem:[%s176 + $0x4] sm:$0xf]
    %v181 = vunpack.c.l.b16 %v177
    %v182 = vunpack.c.l.b16 %v178
    %v183 = vpack.c.b16 %v182, %v181
    %v186 = vsel %vm78, %v175, 0
    %188 = vmatprep.subr.bf16.mxu0 0
    %189 = vmatpush1.bf16.msra.mxu0 0
    %190 = vmatprep.subr.bf16.mxu0 0
    %191 = vmatpush1.bf16.msra.mxu0 0
    %192 = vmatprep.subr.bf16.mxu0 0
    %193 = vmatpush1.bf16.msra.mxu0 0
    %194 = vmatprep.subr.bf16.mxu0 0
    %195 = vmatpush1.bf16.msra.mxu0 0
    %196 = vmatprep.subr.bf16.mxu0 0
    %197 = vmatpush1.bf16.msra.mxu0 0
    %198 = vmatprep.subr.bf16.mxu0 0
    %199 = vmatpush1.bf16.msra.mxu0 0
    %200 = vmatprep.subr.bf16.mxu0 0
    %201 = vmatpush1.bf16.msra.mxu0 0
    %202 = vmatprep.subr.bf16.mxu0 0
    %203 = vmatpush1.bf16.msra.mxu0 %v183
    %204 = vmatprep.subr.bf16.mxu0 0
    %205 = vmatpush2.bf16.msra.mxu0 0
    %206 = vmatprep.subr.bf16.mxu0 0
    %207 = vmatpush2.bf16.msra.mxu0 0
    %208 = vmatprep.subr.bf16.mxu0 0
    %209 = vmatpush2.bf16.msra.mxu0 0
    %210 = vmatprep.subr.bf16.mxu0 0
    %211 = vmatpush2.bf16.msra.mxu0 0
    %212 = vmatprep.subr.bf16.mxu0 0
    %213 = vmatpush2.bf16.msra.mxu0 0
    %214 = vmatprep.subr.bf16.mxu0 0
    %215 = vmatpush2.bf16.msra.mxu0 0
    %216 = vmatprep.subr.bf16.mxu0 0
    %217 = vmatpush2.bf16.msra.mxu0 0
    %218 = vmatprep.subr.bf16.mxu0 0
    %219 = vmatpush2.bf16.msra.mxu0 0
    %220 = vmatprep.mubr.bf16.mxu0 0
    %221 = vmatmul.mubr.bf16.gmra.mxu0 %v186
    %v222 = vpop.f32.mrf.mxu0
    %v223 = vadd.f32 0.0, %v222
    %v224 = vpop.f32.mrf.mxu0
    %v225 = vpop.f32.mrf.mxu0
    %v226 = vpop.f32.mrf.mxu0
    %227 = vdwg.mxu0
    %v228 = vadd.f32 %v166, %v223
    %v229 = vld [vmem:[%s174] sm:$0xf]
    %v230 = vld [vmem:[%s174 + $0x4] sm:$0x1]
    %s231 = scalar_lea.vmem [#allocation5], 24
    %v232 = vld [vmem:[%s231] sm:$0xf]
    %v233 = vld [vmem:[%s231 + $0x4] sm:$0xf]
    %v236 = vunpack.c.l.b16 %v229
    %v237 = vunpack.c.l.b16 %v230
    %v238 = vpack.c.b16 %v237, %v236
    %v240 = vshrl.u32 %v238, 16
    %v242 = vshll.u32 %v238, 16
    %v244 = vrot.slane %v242, 1
    %v245 = vor.u32 %v240, %v244
    %v248 = vunpack.c.l.b16 %v232
    %v249 = vunpack.c.l.b16 %v233
    %v250 = vpack.c.b16 %v249, %v248
    %v253 = vsel %vm78, %v245, 0
    %255 = vmatprep.subr.bf16.mxu0 0
    %256 = vmatpush1.bf16.msra.mxu0 0
    %257 = vmatprep.subr.bf16.mxu0 0
    %258 = vmatpush1.bf16.msra.mxu0 0
    %259 = vmatprep.subr.bf16.mxu0 0
    %260 = vmatpush1.bf16.msra.mxu0 0
    %261 = vmatprep.subr.bf16.mxu0 0
    %262 = vmatpush1.bf16.msra.mxu0 0
    %263 = vmatprep.subr.bf16.mxu0 0
    %264 = vmatpush1.bf16.msra.mxu0 0
    %265 = vmatprep.subr.bf16.mxu0 0
    %266 = vmatpush1.bf16.msra.mxu0 0
    %267 = vmatprep.subr.bf16.mxu0 0
    %268 = vmatpush1.bf16.msra.mxu0 0
    %269 = vmatprep.subr.bf16.mxu0 0
    %270 = vmatpush1.bf16.msra.mxu0 %v250
    %271 = vmatprep.subr.bf16.mxu0 0
    %272 = vmatpush2.bf16.msra.mxu0 0
    %273 = vmatprep.subr.bf16.mxu0 0
    %274 = vmatpush2.bf16.msra.mxu0 0
    %275 = vmatprep.subr.bf16.mxu0 0
    %276 = vmatpush2.bf16.msra.mxu0 0
    %277 = vmatprep.subr.bf16.mxu0 0
    %278 = vmatpush2.bf16.msra.mxu0 0
    %279 = vmatprep.subr.bf16.mxu0 0
    %280 = vmatpush2.bf16.msra.mxu0 0
    %281 = vmatprep.subr.bf16.mxu0 0
    %282 = vmatpush2.bf16.msra.mxu0 0
    %283 = vmatprep.subr.bf16.mxu0 0
    %284 = vmatpush2.bf16.msra.mxu0 0
    %285 = vmatprep.subr.bf16.mxu0 0
    %286 = vmatpush2.bf16.msra.mxu0 0
    %287 = vmatprep.mubr.bf16.mxu0 0
    %288 = vmatmul.mubr.bf16.gmra.mxu0 %v253
    %v289 = vpop.f32.mrf.mxu0
    %v290 = vadd.f32 0.0, %v289
    %v291 = vpop.f32.mrf.mxu0
    %v292 = vpop.f32.mrf.mxu0
    %v293 = vpop.f32.mrf.mxu0
    %294 = vdwg.mxu0
    %v295 = vadd.f32 %v228, %v290
    %v297 = vlaneseq
    %v298 = vshrl.u32 %v297, 7
    %v299 = vsub.s32 0, %v298
    %v300 = vrot.slane %v47, %v299
    %v302 = vmul.f32 %v295, %v300
    %v304 = vlaneseq
    %v305 = vshrl.u32 %v304, 7
    %v306 = vsub.s32 0, %v305
    %v307 = vrot.slane %v48, %v306
    %v309 = vadd.f32 %v302, %v307
    %vm310 = vcmp.ge.f32.partialorder %v309, 0.0
    %v311 = vmul.f32 %v309, 0.2
    %v312 = vsel %vm310, %v309, %v311
    %313 = vst [vmem:[#allocation7] sm:$0xff] %v312
    %v314 = vld [vmem:[%s174] sm:$0xf]
    %v315 = vld [vmem:[#allocation5] sm:$0xf]
    %v316 = vld [vmem:[#allocation5 + $0x4] sm:$0xf]
    %v317 = vld [vmem:[%s174 + $0x4] sm:$0x1]
    %v318 = vld [vmem:[%s57] sm:$0xf]
    %v319 = vld [vmem:[%s57 + $0x4] sm:$0xf]
    %v322 = vunpack.c.l.b16 %v314
    %v323 = vunpack.c.l.b16 %v317
    %v324 = vpack.c.b16 %v323, %v322
    %v326 = vshrl.u32 %v324, 16
    %v328 = vshll.u32 %v324, 16
    %v330 = vrot.slane %v328, 1
    %v331 = vor.u32 %v326, %v330
    %v334 = vunpack.c.l.b16 %v318
    %v335 = vunpack.c.l.b16 %v319
    %v336 = vpack.c.b16 %v335, %v334
    %v339 = vsel %vm78, %v331, 0
    %341 = vmatprep.subr.bf16.mxu0 0
    %342 = vmatpush1.bf16.msra.mxu0 0
    %343 = vmatprep.subr.bf16.mxu0 0
    %344 = vmatpush1.bf16.msra.mxu0 0
    %345 = vmatprep.subr.bf16.mxu0 0
    %346 = vmatpush1.bf16.msra.mxu0 0
    %347 = vmatprep.subr.bf16.mxu0 0
    %348 = vmatpush1.bf16.msra.mxu0 0
    %349 = vmatprep.subr.bf16.mxu0 0
    %350 = vmatpush1.bf16.msra.mxu0 0
    %351 = vmatprep.subr.bf16.mxu0 0
    %352 = vmatpush1.bf16.msra.mxu0 0
    %353 = vmatprep.subr.bf16.mxu0 0
    %354 = vmatpush1.bf16.msra.mxu0 0
    %355 = vmatprep.subr.bf16.mxu0 0
    %356 = vmatpush1.bf16.msra.mxu0 %v336
    %357 = vmatprep.subr.bf16.mxu0 0
    %358 = vmatpush2.bf16.msra.mxu0 0
    %359 = vmatprep.subr.bf16.mxu0 0
    %360 = vmatpush2.bf16.msra.mxu0 0
    %361 = vmatprep.subr.bf16.mxu0 0
    %362 = vmatpush2.bf16.msra.mxu0 0
    %363 = vmatprep.subr.bf16.mxu0 0
    %364 = vmatpush2.bf16.msra.mxu0 0
    %365 = vmatprep.subr.bf16.mxu0 0
    %366 = vmatpush2.bf16.msra.mxu0 0
    %367 = vmatprep.subr.bf16.mxu0 0
    %368 = vmatpush2.bf16.msra.mxu0 0
    %369 = vmatprep.subr.bf16.mxu0 0
    %370 = vmatpush2.bf16.msra.mxu0 0
    %371 = vmatprep.subr.bf16.mxu0 0
    %372 = vmatpush2.bf16.msra.mxu0 0
    %373 = vmatprep.mubr.bf16.mxu0 0
    %374 = vmatmul.mubr.bf16.gmra.mxu0 %v339
    %v375 = vpop.f32.mrf.mxu0
    %v376 = vadd.f32 0.0, %v375
    %v377 = vpop.f32.mrf.mxu0
    %v378 = vpop.f32.mrf.mxu0
    %v379 = vpop.f32.mrf.mxu0
    %380 = vdwg.mxu0
    %v383 = vunpack.c.l.b16 %v315
    %v384 = vunpack.c.l.b16 %v316
    %v385 = vpack.c.b16 %v384, %v383
    %v388 = vsel %vm78, %v314, 0
    %390 = vmatprep.subr.bf16.mxu0 0
    %391 = vmatpush1.bf16.msra.mxu0 0
    %392 = vmatprep.subr.bf16.mxu0 0
    %393 = vmatpush1.bf16.msra.mxu0 0
    %394 = vmatprep.subr.bf16.mxu0 0
    %395 = vmatpush1.bf16.msra.mxu0 0
    %396 = vmatprep.subr.bf16.mxu0 0
    %397 = vmatpush1.bf16.msra.mxu0 0
    %398 = vmatprep.subr.bf16.mxu0 0
    %399 = vmatpush1.bf16.msra.mxu0 0
    %400 = vmatprep.subr.bf16.mxu0 0
    %401 = vmatpush1.bf16.msra.mxu0 0
    %402 = vmatprep.subr.bf16.mxu0 0
    %403 = vmatpush1.bf16.msra.mxu0 0
    %404 = vmatprep.subr.bf16.mxu0 0
    %405 = vmatpush1.bf16.msra.mxu0 %v385
    %406 = vmatprep.subr.bf16.mxu0 0
    %407 = vmatpush2.bf16.msra.mxu0 0
    %408 = vmatprep.subr.bf16.mxu0 0
    %409 = vmatpush2.bf16.msra.mxu0 0
    %410 = vmatprep.subr.bf16.mxu0 0
    %411 = vmatpush2.bf16.msra.mxu0 0
    %412 = vmatprep.subr.bf16.mxu0 0
    %413 = vmatpush2.bf16.msra.mxu0 0
    %414 = vmatprep.subr.bf16.mxu0 0
    %415 = vmatpush2.bf16.msra.mxu0 0
    %416 = vmatprep.subr.bf16.mxu0 0
    %417 = vmatpush2.bf16.msra.mxu0 0
    %418 = vmatprep.subr.bf16.mxu0 0
    %419 = vmatpush2.bf16.msra.mxu0 0
    %420 = vmatprep.subr.bf16.mxu0 0
    %421 = vmatpush2.bf16.msra.mxu0 0
    %422 = vmatprep.mubr.bf16.mxu0 0
    %423 = vmatmul.mubr.bf16.gmra.mxu0 %v388
    %v424 = vpop.f32.mrf.mxu0
    %v425 = vadd.f32 %v376, %v424
    %v426 = vpop.f32.mrf.mxu0
    %v427 = vpop.f32.mrf.mxu0
    %v428 = vpop.f32.mrf.mxu0
    %429 = vdwg.mxu0
    %s430 = sadd.s32 %s49, 2
    %s431 = smul.u32 %s430, 2
    %s432 = smul.addr %s431, 4
    %s433 = scalar_lea.vmem [#allocation2], %s432
    %v434 = vld [vmem:[%s433] sm:$0xf]
    %v435 = vld [vmem:[%s176] sm:$0xf]
    %v436 = vld [vmem:[%s176 + $0x4] sm:$0xf]
    %v439 = vunpack.c.l.b16 %v435
    %v440 = vunpack.c.l.b16 %v436
    %v441 = vpack.c.b16 %v440, %v439
    %v444 = vsel %vm78, %v434, 0
    %446 = vmatprep.subr.bf16.mxu0 0
    %447 = vmatpush1.bf16.msra.mxu0 0
    %448 = vmatprep.subr.bf16.mxu0 0
    %449 = vmatpush1.bf16.msra.mxu0 0
    %450 = vmatprep.subr.bf16.mxu0 0
    %451 = vmatpush1.bf16.msra.mxu0 0
    %452 = vmatprep.subr.bf16.mxu0 0
    %453 = vmatpush1.bf16.msra.mxu0 0
    %454 = vmatprep.subr.bf16.mxu0 0
    %455 = vmatpush1.bf16.msra.mxu0 0
    %456 = vmatprep.subr.bf16.mxu0 0
    %457 = vmatpush1.bf16.msra.mxu0 0
    %458 = vmatprep.subr.bf16.mxu0 0
    %459 = vmatpush1.bf16.msra.mxu0 0
    %460 = vmatprep.subr.bf16.mxu0 0
    %461 = vmatpush1.bf16.msra.mxu0 %v441
    %462 = vmatprep.subr.bf16.mxu0 0
    %463 = vmatpush2.bf16.msra.mxu0 0
    %464 = vmatprep.subr.bf16.mxu0 0
    %465 = vmatpush2.bf16.msra.mxu0 0
    %466 = vmatprep.subr.bf16.mxu0 0
    %467 = vmatpush2.bf16.msra.mxu0 0
    %468 = vmatprep.subr.bf16.mxu0 0
    %469 = vmatpush2.bf16.msra.mxu0 0
    %470 = vmatprep.subr.bf16.mxu0 0
    %471 = vmatpush2.bf16.msra.mxu0 0
    %472 = vmatprep.subr.bf16.mxu0 0
    %473 = vmatpush2.bf16.msra.mxu0 0
    %474 = vmatprep.subr.bf16.mxu0 0
    %475 = vmatpush2.bf16.msra.mxu0 0
    %476 = vmatprep.subr.bf16.mxu0 0
    %477 = vmatpush2.bf16.msra.mxu0 0
    %478 = vmatprep.mubr.bf16.mxu0 0
    %479 = vmatmul.mubr.bf16.gmra.mxu0 %v444
    %v480 = vpop.f32.mrf.mxu0
    %v481 = vadd.f32 0.0, %v480
    %v482 = vpop.f32.mrf.mxu0
    %v483 = vpop.f32.mrf.mxu0
    %v484 = vpop.f32.mrf.mxu0
    %485 = vdwg.mxu0
    %v486 = vadd.f32 %v425, %v481
    %v487 = vld [vmem:[%s433] sm:$0xf]
    %v488 = vld [vmem:[%s433 + $0x4] sm:$0x1]
    %v489 = vld [vmem:[%s231] sm:$0xf]
    %v490 = vld [vmem:[%s231 + $0x4] sm:$0xf]
    %v493 = vunpack.c.l.b16 %v487
    %v494 = vunpack.c.l.b16 %v488
    %v495 = vpack.c.b16 %v494, %v493
    %v497 = vshrl.u32 %v495, 16
    %v499 = vshll.u32 %v495, 16
    %v501 = vrot.slane %v499, 1
    %v502 = vor.u32 %v497, %v501
    %v505 = vunpack.c.l.b16 %v489
    %v506 = vunpack.c.l.b16 %v490
    %v507 = vpack.c.b16 %v506, %v505
    %v510 = vsel %vm78, %v502, 0
    %512 = vmatprep.subr.bf16.mxu0 0
    %513 = vmatpush1.bf16.msra.mxu0 0
    %514 = vmatprep.subr.bf16.mxu0 0
    %515 = vmatpush1.bf16.msra.mxu0 0
    %516 = vmatprep.subr.bf16.mxu0 0
    %517 = vmatpush1.bf16.msra.mxu0 0
    %518 = vmatprep.subr.bf16.mxu0 0
    %519 = vmatpush1.bf16.msra.mxu0 0
    %520 = vmatprep.subr.bf16.mxu0 0
    %521 = vmatpush1.bf16.msra.mxu0 0
    %522 = vmatprep.subr.bf16.mxu0 0
    %523 = vmatpush1.bf16.msra.mxu0 0
    %524 = vmatprep.subr.bf16.mxu0 0
    %525 = vmatpush1.bf16.msra.mxu0 0
    %526 = vmatprep.subr.bf16.mxu0 0
    %527 = vmatpush1.bf16.msra.mxu0 %v507
    %528 = vmatprep.subr.bf16.mxu0 0
    %529 = vmatpush2.bf16.msra.mxu0 0
    %530 = vmatprep.subr.bf16.mxu0 0
    %531 = vmatpush2.bf16.msra.mxu0 0
    %532 = vmatprep.subr.bf16.mxu0 0
    %533 = vmatpush2.bf16.msra.mxu0 0
    %534 = vmatprep.subr.bf16.mxu0 0
    %535 = vmatpush2.bf16.msra.mxu0 0
    %536 = vmatprep.subr.bf16.mxu0 0
    %537 = vmatpush2.bf16.msra.mxu0 0
    %538 = vmatprep.subr.bf16.mxu0 0
    %539 = vmatpush2.bf16.msra.mxu0 0
    %540 = vmatprep.subr.bf16.mxu0 0
    %541 = vmatpush2.bf16.msra.mxu0 0
    %542 = vmatprep.subr.bf16.mxu0 0
    %543 = vmatpush2.bf16.msra.mxu0 0
    %544 = vmatprep.mubr.bf16.mxu0 0
    %545 = vmatmul.mubr.bf16.gmra.mxu0 %v510
    %v546 = vpop.f32.mrf.mxu0
    %v547 = vadd.f32 0.0, %v546
    %v548 = vpop.f32.mrf.mxu0
    %v549 = vpop.f32.mrf.mxu0
    %v550 = vpop.f32.mrf.mxu0
    %551 = vdwg.mxu0
    %v552 = vadd.f32 %v486, %v547
    %v553 = vmul.f32 %v552, %v300
    %v554 = vadd.f32 %v553, %v307
    %vm555 = vcmp.ge.f32.partialorder %v554, 0.0
    %v556 = vmul.f32 %v554, 0.2
    %v557 = vsel %vm555, %v554, %v556
    %558 = vst [vmem:[#allocation7 + $0x8] sm:$0xff] %v557
    %v559 = vld [vmem:[%s433] sm:$0xf]
    %v560 = vld [vmem:[#allocation5] sm:$0xf]
    %v561 = vld [vmem:[#allocation5 + $0x4] sm:$0xf]
    %v562 = vld [vmem:[%s433 + $0x4] sm:$0x1]
    %v563 = vld [vmem:[%s57] sm:$0xf]
    %v564 = vld [vmem:[%s57 + $0x4] sm:$0xf]
    %v567 = vunpack.c.l.b16 %v559
    %v568 = vunpack.c.l.b16 %v562
    %v569 = vpack.c.b16 %v568, %v567
    %v571 = vshrl.u32 %v569, 16
    %v573 = vshll.u32 %v569, 16
    %v575 = vrot.slane %v573, 1
    %v576 = vor.u32 %v571, %v575
    %v579 = vunpack.c.l.b16 %v563
    %v580 = vunpack.c.l.b16 %v564
    %v581 = vpack.c.b16 %v580, %v579
    %v584 = vsel %vm78, %v576, 0
    %586 = vmatprep.subr.bf16.mxu0 0
    %587 = vmatpush1.bf16.msra.mxu0 0
    %588 = vmatprep.subr.bf16.mxu0 0
    %589 = vmatpush1.bf16.msra.mxu0 0
    %590 = vmatprep.subr.bf16.mxu0 0
    %591 = vmatpush1.bf16.msra.mxu0 0
    %592 = vmatprep.subr.bf16.mxu0 0
    %593 = vmatpush1.bf16.msra.mxu0 0
    %594 = vmatprep.subr.bf16.mxu0 0
    %595 = vmatpush1.bf16.msra.mxu0 0
    %596 = vmatprep.subr.bf16.mxu0 0
    %597 = vmatpush1.bf16.msra.mxu0 0
    %598 = vmatprep.subr.bf16.mxu0 0
    %599 = vmatpush1.bf16.msra.mxu0 0
    %600 = vmatprep.subr.bf16.mxu0 0
    %601 = vmatpush1.bf16.msra.mxu0 %v581
    %602 = vmatprep.subr.bf16.mxu0 0
    %603 = vmatpush2.bf16.msra.mxu0 0
    %604 = vmatprep.subr.bf16.mxu0 0
    %605 = vmatpush2.bf16.msra.mxu0 0
    %606 = vmatprep.subr.bf16.mxu0 0
    %607 = vmatpush2.bf16.msra.mxu0 0
    %608 = vmatprep.subr.bf16.mxu0 0
    %609 = vmatpush2.bf16.msra.mxu0 0
    %610 = vmatprep.subr.bf16.mxu0 0
    %611 = vmatpush2.bf16.msra.mxu0 0
    %612 = vmatprep.subr.bf16.mxu0 0
    %613 = vmatpush2.bf16.msra.mxu0 0
    %614 = vmatprep.subr.bf16.mxu0 0
    %615 = vmatpush2.bf16.msra.mxu0 0
    %616 = vmatprep.subr.bf16.mxu0 0
    %617 = vmatpush2.bf16.msra.mxu0 0
    %618 = vmatprep.mubr.bf16.mxu0 0
    %619 = vmatmul.mubr.bf16.gmra.mxu0 %v584
    %v620 = vpop.f32.mrf.mxu0
    %v621 = vadd.f32 0.0, %v620
    %v622 = vpop.f32.mrf.mxu0
    %v623 = vpop.f32.mrf.mxu0
    %v624 = vpop.f32.mrf.mxu0
    %625 = vdwg.mxu0
    %v628 = vunpack.c.l.b16 %v560
    %v629 = vunpack.c.l.b16 %v561
    %v630 = vpack.c.b16 %v629, %v628
    %v633 = vsel %vm78, %v559, 0
    %635 = vmatprep.subr.bf16.mxu0 0
    %636 = vmatpush1.bf16.msra.mxu0 0
    %637 = vmatprep.subr.bf16.mxu0 0
    %638 = vmatpush1.bf16.msra.mxu0 0
    %639 = vmatprep.subr.bf16.mxu0 0
    %640 = vmatpush1.bf16.msra.mxu0 0
    %641 = vmatprep.subr.bf16.mxu0 0
    %642 = vmatpush1.bf16.msra.mxu0 0
    %643 = vmatprep.subr.bf16.mxu0 0
    %644 = vmatpush1.bf16.msra.mxu0 0
    %645 = vmatprep.subr.bf16.mxu0 0
    %646 = vmatpush1.bf16.msra.mxu0 0
    %647 = vmatprep.subr.bf16.mxu0 0
    %648 = vmatpush1.bf16.msra.mxu0 0
    %649 = vmatprep.subr.bf16.mxu0 0
    %650 = vmatpush1.bf16.msra.mxu0 %v630
    %651 = vmatprep.subr.bf16.mxu0 0
    %652 = vmatpush2.bf16.msra.mxu0 0
    %653 = vmatprep.subr.bf16.mxu0 0
    %654 = vmatpush2.bf16.msra.mxu0 0
    %655 = vmatprep.subr.bf16.mxu0 0
    %656 = vmatpush2.bf16.msra.mxu0 0
    %657 = vmatprep.subr.bf16.mxu0 0
    %658 = vmatpush2.bf16.msra.mxu0 0
    %659 = vmatprep.subr.bf16.mxu0 0
    %660 = vmatpush2.bf16.msra.mxu0 0
    %661 = vmatprep.subr.bf16.mxu0 0
    %662 = vmatpush2.bf16.msra.mxu0 0
    %663 = vmatprep.subr.bf16.mxu0 0
    %664 = vmatpush2.bf16.msra.mxu0 0
    %665 = vmatprep.subr.bf16.mxu0 0
    %666 = vmatpush2.bf16.msra.mxu0 0
    %667 = vmatprep.mubr.bf16.mxu0 0
    %668 = vmatmul.mubr.bf16.gmra.mxu0 %v633
    %v669 = vpop.f32.mrf.mxu0
    %v670 = vadd.f32 %v621, %v669
    %v671 = vpop.f32.mrf.mxu0
    %v672 = vpop.f32.mrf.mxu0
    %v673 = vpop.f32.mrf.mxu0
    %674 = vdwg.mxu0
    %s675 = sadd.s32 %s49, 3
    %s676 = smul.u32 %s675, 2
    %s677 = smul.addr %s676, 4
    %s678 = scalar_lea.vmem [#allocation2], %s677
    %v679 = vld [vmem:[%s678] sm:$0xf]
    %v680 = vld [vmem:[%s176] sm:$0xf]
    %v681 = vld [vmem:[%s176 + $0x4] sm:$0xf]
    %v684 = vunpack.c.l.b16 %v680
    %v685 = vunpack.c.l.b16 %v681
    %v686 = vpack.c.b16 %v685, %v684
    %v689 = vsel %vm78, %v679, 0
    %691 = vmatprep.subr.bf16.mxu0 0
    %692 = vmatpush1.bf16.msra.mxu0 0
    %693 = vmatprep.subr.bf16.mxu0 0
    %694 = vmatpush1.bf16.msra.mxu0 0
    %695 = vmatprep.subr.bf16.mxu0 0
    %696 = vmatpush1.bf16.msra.mxu0 0
    %697 = vmatprep.subr.bf16.mxu0 0
    %698 = vmatpush1.bf16.msra.mxu0 0
    %699 = vmatprep.subr.bf16.mxu0 0
    %700 = vmatpush1.bf16.msra.mxu0 0
    %701 = vmatprep.subr.bf16.mxu0 0
    %702 = vmatpush1.bf16.msra.mxu0 0
    %703 = vmatprep.subr.bf16.mxu0 0
    %704 = vmatpush1.bf16.msra.mxu0 0
    %705 = vmatprep.subr.bf16.mxu0 0
    %706 = vmatpush1.bf16.msra.mxu0 %v686
    %707 = vmatprep.subr.bf16.mxu0 0
    %708 = vmatpush2.bf16.msra.mxu0 0
    %709 = vmatprep.subr.bf16.mxu0 0
    %710 = vmatpush2.bf16.msra.mxu0 0
    %711 = vmatprep.subr.bf16.mxu0 0
    %712 = vmatpush2.bf16.msra.mxu0 0
    %713 = vmatprep.subr.bf16.mxu0 0
    %714 = vmatpush2.bf16.msra.mxu0 0
    %715 = vmatprep.subr.bf16.mxu0 0
    %716 = vmatpush2.bf16.msra.mxu0 0
    %717 = vmatprep.subr.bf16.mxu0 0
    %718 = vmatpush2.bf16.msra.mxu0 0
    %719 = vmatprep.subr.bf16.mxu0 0
    %720 = vmatpush2.bf16.msra.mxu0 0
    %721 = vmatprep.subr.bf16.mxu0 0
    %722 = vmatpush2.bf16.msra.mxu0 0
    %723 = vmatprep.mubr.bf16.mxu0 0
    %724 = vmatmul.mubr.bf16.gmra.mxu0 %v689
    %v725 = vpop.f32.mrf.mxu0
    %v726 = vadd.f32 0.0, %v725
    %v727 = vpop.f32.mrf.mxu0
    %v728 = vpop.f32.mrf.mxu0
    %v729 = vpop.f32.mrf.mxu0
    %730 = vdwg.mxu0
    %v731 = vadd.f32 %v670, %v726
    %v732 = vld [vmem:[%s678] sm:$0xf]
    %v733 = vld [vmem:[%s678 + $0x4] sm:$0x1]
    %v734 = vld [vmem:[%s231] sm:$0xf]
    %v735 = vld [vmem:[%s231 + $0x4] sm:$0xf]
    %v738 = vunpack.c.l.b16 %v732
    %v739 = vunpack.c.l.b16 %v733
    %v740 = vpack.c.b16 %v739, %v738
    %v742 = vshrl.u32 %v740, 16
    %v744 = vshll.u32 %v740, 16
    %v746 = vrot.slane %v744, 1
    %v747 = vor.u32 %v742, %v746
    %v750 = vunpack.c.l.b16 %v734
    %v751 = vunpack.c.l.b16 %v735
    %v752 = vpack.c.b16 %v751, %v750
    %v755 = vsel %vm78, %v747, 0
    %757 = vmatprep.subr.bf16.mxu0 0
    %758 = vmatpush1.bf16.msra.mxu0 0
    %759 = vmatprep.subr.bf16.mxu0 0
    %760 = vmatpush1.bf16.msra.mxu0 0
    %761 = vmatprep.subr.bf16.mxu0 0
    %762 = vmatpush1.bf16.msra.mxu0 0
    %763 = vmatprep.subr.bf16.mxu0 0
    %764 = vmatpush1.bf16.msra.mxu0 0
    %765 = vmatprep.subr.bf16.mxu0 0
    %766 = vmatpush1.bf16.msra.mxu0 0
    %767 = vmatprep.subr.bf16.mxu0 0
    %768 = vmatpush1.bf16.msra.mxu0 0
    %769 = vmatprep.subr.bf16.mxu0 0
    %770 = vmatpush1.bf16.msra.mxu0 0
    %771 = vmatprep.subr.bf16.mxu0 0
    %772 = vmatpush1.bf16.msra.mxu0 %v752
    %773 = vmatprep.subr.bf16.mxu0 0
    %774 = vmatpush2.bf16.msra.mxu0 0
    %775 = vmatprep.subr.bf16.mxu0 0
    %776 = vmatpush2.bf16.msra.mxu0 0
    %777 = vmatprep.subr.bf16.mxu0 0
    %778 = vmatpush2.bf16.msra.mxu0 0
    %779 = vmatprep.subr.bf16.mxu0 0
    %780 = vmatpush2.bf16.msra.mxu0 0
    %781 = vmatprep.subr.bf16.mxu0 0
    %782 = vmatpush2.bf16.msra.mxu0 0
    %783 = vmatprep.subr.bf16.mxu0 0
    %784 = vmatpush2.bf16.msra.mxu0 0
    %785 = vmatprep.subr.bf16.mxu0 0
    %786 = vmatpush2.bf16.msra.mxu0 0
    %787 = vmatprep.subr.bf16.mxu0 0
    %788 = vmatpush2.bf16.msra.mxu0 0
    %789 = vmatprep.mubr.bf16.mxu0 0
    %790 = vmatmul.mubr.bf16.gmra.mxu0 %v755
    %v791 = vpop.f32.mrf.mxu0
    %v792 = vadd.f32 0.0, %v791
    %v793 = vpop.f32.mrf.mxu0
    %v794 = vpop.f32.mrf.mxu0
    %v795 = vpop.f32.mrf.mxu0
    %796 = vdwg.mxu0
    %v797 = vadd.f32 %v731, %v792
    %v798 = vmul.f32 %v797, %v300
    %v799 = vadd.f32 %v798, %v307
    %vm800 = vcmp.ge.f32.partialorder %v799, 0.0
    %v801 = vmul.f32 %v799, 0.2
    %v802 = vsel %vm800, %v799, %v801
    %803 = vst [vmem:[#allocation7 + $0x10] sm:$0xff] %v802
    %v804 = vld [vmem:[%s678] sm:$0xf]
    %v805 = vld [vmem:[#allocation5] sm:$0xf]
    %v806 = vld [vmem:[#allocation5 + $0x4] sm:$0xf]
    %v807 = vld [vmem:[%s678 + $0x4] sm:$0x1]
    %v808 = vld [vmem:[%s57] sm:$0xf]
    %v809 = vld [vmem:[%s57 + $0x4] sm:$0xf]
    %v812 = vunpack.c.l.b16 %v804
    %v813 = vunpack.c.l.b16 %v807
    %v814 = vpack.c.b16 %v813, %v812
    %v816 = vshrl.u32 %v814, 16
    %v818 = vshll.u32 %v814, 16
    %v820 = vrot.slane %v818, 1
    %v821 = vor.u32 %v816, %v820
    %v824 = vunpack.c.l.b16 %v808
    %v825 = vunpack.c.l.b16 %v809
    %v826 = vpack.c.b16 %v825, %v824
    %v829 = vsel %vm78, %v821, 0
    %831 = vmatprep.subr.bf16.mxu0 0
    %832 = vmatpush1.bf16.msra.mxu0 0
    %833 = vmatprep.subr.bf16.mxu0 0
    %834 = vmatpush1.bf16.msra.mxu0 0
    %835 = vmatprep.subr.bf16.mxu0 0
    %836 = vmatpush1.bf16.msra.mxu0 0
    %837 = vmatprep.subr.bf16.mxu0 0
    %838 = vmatpush1.bf16.msra.mxu0 0
    %839 = vmatprep.subr.bf16.mxu0 0
    %840 = vmatpush1.bf16.msra.mxu0 0
    %841 = vmatprep.subr.bf16.mxu0 0
    %842 = vmatpush1.bf16.msra.mxu0 0
    %843 = vmatprep.subr.bf16.mxu0 0
    %844 = vmatpush1.bf16.msra.mxu0 0
    %845 = vmatprep.subr.bf16.mxu0 0
    %846 = vmatpush1.bf16.msra.mxu0 %v826
    %847 = vmatprep.subr.bf16.mxu0 0
    %848 = vmatpush2.bf16.msra.mxu0 0
    %849 = vmatprep.subr.bf16.mxu0 0
    %850 = vmatpush2.bf16.msra.mxu0 0
    %851 = vmatprep.subr.bf16.mxu0 0
    %852 = vmatpush2.bf16.msra.mxu0 0
    %853 = vmatprep.subr.bf16.mxu0 0
    %854 = vmatpush2.bf16.msra.mxu0 0
    %855 = vmatprep.subr.bf16.mxu0 0
    %856 = vmatpush2.bf16.msra.mxu0 0
    %857 = vmatprep.subr.bf16.mxu0 0
    %858 = vmatpush2.bf16.msra.mxu0 0
    %859 = vmatprep.subr.bf16.mxu0 0
    %860 = vmatpush2.bf16.msra.mxu0 0
    %861 = vmatprep.subr.bf16.mxu0 0
    %862 = vmatpush2.bf16.msra.mxu0 0
    %863 = vmatprep.mubr.bf16.mxu0 0
    %864 = vmatmul.mubr.bf16.gmra.mxu0 %v829
    %v865 = vpop.f32.mrf.mxu0
    %v866 = vadd.f32 0.0, %v865
    %v867 = vpop.f32.mrf.mxu0
    %v868 = vpop.f32.mrf.mxu0
    %v869 = vpop.f32.mrf.mxu0
    %870 = vdwg.mxu0
    %v873 = vunpack.c.l.b16 %v805
    %v874 = vunpack.c.l.b16 %v806
    %v875 = vpack.c.b16 %v874, %v873
    %v878 = vsel %vm78, %v804, 0
    %880 = vmatprep.subr.bf16.mxu0 0
    %881 = vmatpush1.bf16.msra.mxu0 0
    %882 = vmatprep.subr.bf16.mxu0 0
    %883 = vmatpush1.bf16.msra.mxu0 0
    %884 = vmatprep.subr.bf16.mxu0 0
    %885 = vmatpush1.bf16.msra.mxu0 0
    %886 = vmatprep.subr.bf16.mxu0 0
    %887 = vmatpush1.bf16.msra.mxu0 0
    %888 = vmatprep.subr.bf16.mxu0 0
    %889 = vmatpush1.bf16.msra.mxu0 0
    %890 = vmatprep.subr.bf16.mxu0 0
    %891 = vmatpush1.bf16.msra.mxu0 0
    %892 = vmatprep.subr.bf16.mxu0 0
    %893 = vmatpush1.bf16.msra.mxu0 0
    %894 = vmatprep.subr.bf16.mxu0 0
    %895 = vmatpush1.bf16.msra.mxu0 %v875
    %896 = vmatprep.subr.bf16.mxu0 0
    %897 = vmatpush2.bf16.msra.mxu0 0
    %898 = vmatprep.subr.bf16.mxu0 0
    %899 = vmatpush2.bf16.msra.mxu0 0
    %900 = vmatprep.subr.bf16.mxu0 0
    %901 = vmatpush2.bf16.msra.mxu0 0
    %902 = vmatprep.subr.bf16.mxu0 0
    %903 = vmatpush2.bf16.msra.mxu0 0
    %904 = vmatprep.subr.bf16.mxu0 0
    %905 = vmatpush2.bf16.msra.mxu0 0
    %906 = vmatprep.subr.bf16.mxu0 0
    %907 = vmatpush2.bf16.msra.mxu0 0
    %908 = vmatprep.subr.bf16.mxu0 0
    %909 = vmatpush2.bf16.msra.mxu0 0
    %910 = vmatprep.subr.bf16.mxu0 0
    %911 = vmatpush2.bf16.msra.mxu0 0
    %912 = vmatprep.mubr.bf16.mxu0 0
    %913 = vmatmul.mubr.bf16.gmra.mxu0 %v878
    %v914 = vpop.f32.mrf.mxu0
    %v915 = vadd.f32 %v866, %v914
    %v916 = vpop.f32.mrf.mxu0
    %v917 = vpop.f32.mrf.mxu0
    %v918 = vpop.f32.mrf.mxu0
    %919 = vdwg.mxu0
    %s920 = sadd.s32 %s49, 4
    %s921 = smul.u32 %s920, 2
    %s922 = smul.addr %s921, 4
    %s923 = scalar_lea.vmem [#allocation2], %s922
    %v924 = vld [vmem:[%s923] sm:$0xf]
    %v925 = vld [vmem:[%s176] sm:$0xf]
    %v926 = vld [vmem:[%s176 + $0x4] sm:$0xf]
    %v929 = vunpack.c.l.b16 %v925
    %v930 = vunpack.c.l.b16 %v926
    %v931 = vpack.c.b16 %v930, %v929
    %v934 = vsel %vm78, %v924, 0
    %936 = vmatprep.subr.bf16.mxu0 0
    %937 = vmatpush1.bf16.msra.mxu0 0
    %938 = vmatprep.subr.bf16.mxu0 0
    %939 = vmatpush1.bf16.msra.mxu0 0
    %940 = vmatprep.subr.bf16.mxu0 0
    %941 = vmatpush1.bf16.msra.mxu0 0
    %942 = vmatprep.subr.bf16.mxu0 0
    %943 = vmatpush1.bf16.msra.mxu0 0
    %944 = vmatprep.subr.bf16.mxu0 0
    %945 = vmatpush1.bf16.msra.mxu0 0
    %946 = vmatprep.subr.bf16.mxu0 0
    %947 = vmatpush1.bf16.msra.mxu0 0
    %948 = vmatprep.subr.bf16.mxu0 0
    %949 = vmatpush1.bf16.msra.mxu0 0
    %950 = vmatprep.subr.bf16.mxu0 0
    %951 = vmatpush1.bf16.msra.mxu0 %v931
    %952 = vmatprep.subr.bf16.mxu0 0
    %953 = vmatpush2.bf16.msra.mxu0 0
    %954 = vmatprep.subr.bf16.mxu0 0
    %955 = vmatpush2.bf16.msra.mxu0 0
    %956 = vmatprep.subr.bf16.mxu0 0
    %957 = vmatpush2.bf16.msra.mxu0 0
    %958 = vmatprep.subr.bf16.mxu0 0
    %959 = vmatpush2.bf16.msra.mxu0 0
    %960 = vmatprep.subr.bf16.mxu0 0
    %961 = vmatpush2.bf16.msra.mxu0 0
    %962 = vmatprep.subr.bf16.mxu0 0
    %963 = vmatpush2.bf16.msra.mxu0 0
    %964 = vmatprep.subr.bf16.mxu0 0
    %965 = vmatpush2.bf16.msra.mxu0 0
    %966 = vmatprep.subr.bf16.mxu0 0
    %967 = vmatpush2.bf16.msra.mxu0 0
    %968 = vmatprep.mubr.bf16.mxu0 0
    %969 = vmatmul.mubr.bf16.gmra.mxu0 %v934
    %v970 = vpop.f32.mrf.mxu0
    %v971 = vadd.f32 0.0, %v970
    %v972 = vpop.f32.mrf.mxu0
    %v973 = vpop.f32.mrf.mxu0
    %v974 = vpop.f32.mrf.mxu0
    %975 = vdwg.mxu0
    %v976 = vadd.f32 %v915, %v971
    %v977 = vld [vmem:[%s923] sm:$0xf]
    %v978 = vld [vmem:[%s923 + $0x4] sm:$0x1]
    %v979 = vld [vmem:[%s231] sm:$0xf]
    %v980 = vld [vmem:[%s231 + $0x4] sm:$0xf]
    %v983 = vunpack.c.l.b16 %v977
    %v984 = vunpack.c.l.b16 %v978
    %v985 = vpack.c.b16 %v984, %v983
    %v987 = vshrl.u32 %v985, 16
    %v989 = vshll.u32 %v985, 16
    %v991 = vrot.slane %v989, 1
    %v992 = vor.u32 %v987, %v991
    %v995 = vunpack.c.l.b16 %v979
    %v996 = vunpack.c.l.b16 %v980
    %v997 = vpack.c.b16 %v996, %v995
    %v1000 = vsel %vm78, %v992, 0
    %1002 = vmatprep.subr.bf16.mxu0 0
    %1003 = vmatpush1.bf16.msra.mxu0 0
    %1004 = vmatprep.subr.bf16.mxu0 0
    %1005 = vmatpush1.bf16.msra.mxu0 0
    %1006 = vmatprep.subr.bf16.mxu0 0
    %1007 = vmatpush1.bf16.msra.mxu0 0
    %1008 = vmatprep.subr.bf16.mxu0 0
    %1009 = vmatpush1.bf16.msra.mxu0 0
    %1010 = vmatprep.subr.bf16.mxu0 0
    %1011 = vmatpush1.bf16.msra.mxu0 0
    %1012 = vmatprep.subr.bf16.mxu0 0
    %1013 = vmatpush1.bf16.msra.mxu0 0
    %1014 = vmatprep.subr.bf16.mxu0 0
    %1015 = vmatpush1.bf16.msra.mxu0 0
    %1016 = vmatprep.subr.bf16.mxu0 0
    %1017 = vmatpush1.bf16.msra.mxu0 %v997
    %1018 = vmatprep.subr.bf16.mxu0 0
    %1019 = vmatpush2.bf16.msra.mxu0 0
    %1020 = vmatprep.subr.bf16.mxu0 0
    %1021 = vmatpush2.bf16.msra.mxu0 0
    %1022 = vmatprep.subr.bf16.mxu0 0
    %1023 = vmatpush2.bf16.msra.mxu0 0
    %1024 = vmatprep.subr.bf16.mxu0 0
    %1025 = vmatpush2.bf16.msra.mxu0 0
    %1026 = vmatprep.subr.bf16.mxu0 0
    %1027 = vmatpush2.bf16.msra.mxu0 0
    %1028 = vmatprep.subr.bf16.mxu0 0
    %1029 = vmatpush2.bf16.msra.mxu0 0
    %1030 = vmatprep.subr.bf16.mxu0 0
    %1031 = vmatpush2.bf16.msra.mxu0 0
    %1032 = vmatprep.subr.bf16.mxu0 0
    %1033 = vmatpush2.bf16.msra.mxu0 0
    %1034 = vmatprep.mubr.bf16.mxu0 0
    %1035 = vmatmul.mubr.bf16.gmra.mxu0 %v1000
    %v1036 = vpop.f32.mrf.mxu0
    %v1037 = vadd.f32 0.0, %v1036
    %v1038 = vpop.f32.mrf.mxu0
    %v1039 = vpop.f32.mrf.mxu0
    %v1040 = vpop.f32.mrf.mxu0
    %1041 = vdwg.mxu0
    %v1042 = vadd.f32 %v976, %v1037
    %v1043 = vmul.f32 %v1042, %v300
    %v1044 = vadd.f32 %v1043, %v307
    %vm1045 = vcmp.ge.f32.partialorder %v1044, 0.0
    %v1046 = vmul.f32 %v1044, 0.2
    %v1047 = vsel %vm1045, %v1044, %v1046
    %1048 = vst [vmem:[#allocation7 + $0x18] sm:$0xff] %v1047
    %v1049 = vld [vmem:[%s923] sm:$0xf]
    %v1050 = vld [vmem:[#allocation5] sm:$0xf]
    %v1051 = vld [vmem:[#allocation5 + $0x4] sm:$0xf]
    %v1052 = vld [vmem:[%s923 + $0x4] sm:$0x1]
    %v1053 = vld [vmem:[%s57] sm:$0xf]
    %v1054 = vld [vmem:[%s57 + $0x4] sm:$0xf]
    %v1057 = vunpack.c.l.b16 %v1049
    %v1058 = vunpack.c.l.b16 %v1052
    %v1059 = vpack.c.b16 %v1058, %v1057
    %v1061 = vshrl.u32 %v1059, 16
    %v1063 = vshll.u32 %v1059, 16
    %v1065 = vrot.slane %v1063, 1
    %v1066 = vor.u32 %v1061, %v1065
    %v1069 = vunpack.c.l.b16 %v1053
    %v1070 = vunpack.c.l.b16 %v1054
    %v1071 = vpack.c.b16 %v1070, %v1069
    %v1074 = vsel %vm78, %v1066, 0
    %1076 = vmatprep.subr.bf16.mxu0 0
    %1077 = vmatpush1.bf16.msra.mxu0 0
    %1078 = vmatprep.subr.bf16.mxu0 0
    %1079 = vmatpush1.bf16.msra.mxu0 0
    %1080 = vmatprep.subr.bf16.mxu0 0
    %1081 = vmatpush1.bf16.msra.mxu0 0
    %1082 = vmatprep.subr.bf16.mxu0 0
    %1083 = vmatpush1.bf16.msra.mxu0 0
    %1084 = vmatprep.subr.bf16.mxu0 0
    %1085 = vmatpush1.bf16.msra.mxu0 0
    %1086 = vmatprep.subr.bf16.mxu0 0
    %1087 = vmatpush1.bf16.msra.mxu0 0
    %1088 = vmatprep.subr.bf16.mxu0 0
    %1089 = vmatpush1.bf16.msra.mxu0 0
    %1090 = vmatprep.subr.bf16.mxu0 0
    %1091 = vmatpush1.bf16.msra.mxu0 %v1071
    %1092 = vmatprep.subr.bf16.mxu0 0
    %1093 = vmatpush2.bf16.msra.mxu0 0
    %1094 = vmatprep.subr.bf16.mxu0 0
    %1095 = vmatpush2.bf16.msra.mxu0 0
    %1096 = vmatprep.subr.bf16.mxu0 0
    %1097 = vmatpush2.bf16.msra.mxu0 0
    %1098 = vmatprep.subr.bf16.mxu0 0
    %1099 = vmatpush2.bf16.msra.mxu0 0
    %1100 = vmatprep.subr.bf16.mxu0 0
    %1101 = vmatpush2.bf16.msra.mxu0 0
    %1102 = vmatprep.subr.bf16.mxu0 0
    %1103 = vmatpush2.bf16.msra.mxu0 0
    %1104 = vmatprep.subr.bf16.mxu0 0
    %1105 = vmatpush2.bf16.msra.mxu0 0
    %1106 = vmatprep.subr.bf16.mxu0 0
    %1107 = vmatpush2.bf16.msra.mxu0 0
    %1108 = vmatprep.mubr.bf16.mxu0 0
    %1109 = vmatmul.mubr.bf16.gmra.mxu0 %v1074
    %v1110 = vpop.f32.mrf.mxu0
    %v1111 = vadd.f32 0.0, %v1110
    %v1112 = vpop.f32.mrf.mxu0
    %v1113 = vpop.f32.mrf.mxu0
    %v1114 = vpop.f32.mrf.mxu0
    %1115 = vdwg.mxu0
    %v1118 = vunpack.c.l.b16 %v1050
    %v1119 = vunpack.c.l.b16 %v1051
    %v1120 = vpack.c.b16 %v1119, %v1118
    %v1123 = vsel %vm78, %v1049, 0
    %1125 = vmatprep.subr.bf16.mxu0 0
    %1126 = vmatpush1.bf16.msra.mxu0 0
    %1127 = vmatprep.subr.bf16.mxu0 0
    %1128 = vmatpush1.bf16.msra.mxu0 0
    %1129 = vmatprep.subr.bf16.mxu0 0
    %1130 = vmatpush1.bf16.msra.mxu0 0
    %1131 = vmatprep.subr.bf16.mxu0 0
    %1132 = vmatpush1.bf16.msra.mxu0 0
    %1133 = vmatprep.subr.bf16.mxu0 0
    %1134 = vmatpush1.bf16.msra.mxu0 0
    %1135 = vmatprep.subr.bf16.mxu0 0
    %1136 = vmatpush1.bf16.msra.mxu0 0
    %1137 = vmatprep.subr.bf16.mxu0 0
    %1138 = vmatpush1.bf16.msra.mxu0 0
    %1139 = vmatprep.subr.bf16.mxu0 0
    %1140 = vmatpush1.bf16.msra.mxu0 %v1120
    %1141 = vmatprep.subr.bf16.mxu0 0
    %1142 = vmatpush2.bf16.msra.mxu0 0
    %1143 = vmatprep.subr.bf16.mxu0 0
    %1144 = vmatpush2.bf16.msra.mxu0 0
    %1145 = vmatprep.subr.bf16.mxu0 0
    %1146 = vmatpush2.bf16.msra.mxu0 0
    %1147 = vmatprep.subr.bf16.mxu0 0
    %1148 = vmatpush2.bf16.msra.mxu0 0
    %1149 = vmatprep.subr.bf16.mxu0 0
    %1150 = vmatpush2.bf16.msra.mxu0 0
    %1151 = vmatprep.subr.bf16.mxu0 0
    %1152 = vmatpush2.bf16.msra.mxu0 0
    %1153 = vmatprep.subr.bf16.mxu0 0
    %1154 = vmatpush2.bf16.msra.mxu0 0
    %1155 = vmatprep.subr.bf16.mxu0 0
    %1156 = vmatpush2.bf16.msra.mxu0 0
    %1157 = vmatprep.mubr.bf16.mxu0 0
    %1158 = vmatmul.mubr.bf16.gmra.mxu0 %v1123
    %v1159 = vpop.f32.mrf.mxu0
    %v1160 = vadd.f32 %v1111, %v1159
    %v1161 = vpop.f32.mrf.mxu0
    %v1162 = vpop.f32.mrf.mxu0
    %v1163 = vpop.f32.mrf.mxu0
    %1164 = vdwg.mxu0
    %s1165 = sadd.s32 %s49, 5
    %s1166 = smul.u32 %s1165, 2
    %s1167 = smul.addr %s1166, 4
    %s1168 = scalar_lea.vmem [#allocation2], %s1167
    %v1169 = vld [vmem:[%s1168] sm:$0xf]
    %v1170 = vld [vmem:[%s176] sm:$0xf]
    %v1171 = vld [vmem:[%s176 + $0x4] sm:$0xf]
    %v1174 = vunpack.c.l.b16 %v1170
    %v1175 = vunpack.c.l.b16 %v1171
    %v1176 = vpack.c.b16 %v1175, %v1174
    %v1179 = vsel %vm78, %v1169, 0
    %1181 = vmatprep.subr.bf16.mxu0 0
    %1182 = vmatpush1.bf16.msra.mxu0 0
    %1183 = vmatprep.subr.bf16.mxu0 0
    %1184 = vmatpush1.bf16.msra.mxu0 0
    %1185 = vmatprep.subr.bf16.mxu0 0
    %1186 = vmatpush1.bf16.msra.mxu0 0
    %1187 = vmatprep.subr.bf16.mxu0 0
    %1188 = vmatpush1.bf16.msra.mxu0 0
    %1189 = vmatprep.subr.bf16.mxu0 0
    %1190 = vmatpush1.bf16.msra.mxu0 0
    %1191 = vmatprep.subr.bf16.mxu0 0
    %1192 = vmatpush1.bf16.msra.mxu0 0
    %1193 = vmatprep.subr.bf16.mxu0 0
    %1194 = vmatpush1.bf16.msra.mxu0 0
    %1195 = vmatprep.subr.bf16.mxu0 0
    %1196 = vmatpush1.bf16.msra.mxu0 %v1176
    %1197 = vmatprep.subr.bf16.mxu0 0
    %1198 = vmatpush2.bf16.msra.mxu0 0
    %1199 = vmatprep.subr.bf16.mxu0 0
    %1200 = vmatpush2.bf16.msra.mxu0 0
    %1201 = vmatprep.subr.bf16.mxu0 0
    %1202 = vmatpush2.bf16.msra.mxu0 0
    %1203 = vmatprep.subr.bf16.mxu0 0
    %1204 = vmatpush2.bf16.msra.mxu0 0
    %1205 = vmatprep.subr.bf16.mxu0 0
    %1206 = vmatpush2.bf16.msra.mxu0 0
    %1207 = vmatprep.subr.bf16.mxu0 0
    %1208 = vmatpush2.bf16.msra.mxu0 0
    %1209 = vmatprep.subr.bf16.mxu0 0
    %1210 = vmatpush2.bf16.msra.mxu0 0
    %1211 = vmatprep.subr.bf16.mxu0 0
    %1212 = vmatpush2.bf16.msra.mxu0 0
    %1213 = vmatprep.mubr.bf16.mxu0 0
    %1214 = vmatmul.mubr.bf16.gmra.mxu0 %v1179
    %v1215 = vpop.f32.mrf.mxu0
    %v1216 = vadd.f32 0.0, %v1215
    %v1217 = vpop.f32.mrf.mxu0
    %v1218 = vpop.f32.mrf.mxu0
    %v1219 = vpop.f32.mrf.mxu0
    %1220 = vdwg.mxu0
    %v1221 = vadd.f32 %v1160, %v1216
    %v1222 = vld [vmem:[%s1168] sm:$0xf]
    %v1223 = vld [vmem:[%s1168 + $0x4] sm:$0x1]
    %v1224 = vld [vmem:[%s231] sm:$0xf]
    %v1225 = vld [vmem:[%s231 + $0x4] sm:$0xf]
    %v1228 = vunpack.c.l.b16 %v1222
    %v1229 = vunpack.c.l.b16 %v1223
    %v1230 = vpack.c.b16 %v1229, %v1228
    %v1232 = vshrl.u32 %v1230, 16
    %v1234 = vshll.u32 %v1230, 16
    %v1236 = vrot.slane %v1234, 1
    %v1237 = vor.u32 %v1232, %v1236
    %v1240 = vunpack.c.l.b16 %v1224
    %v1241 = vunpack.c.l.b16 %v1225
    %v1242 = vpack.c.b16 %v1241, %v1240
    %v1245 = vsel %vm78, %v1237, 0
    %1247 = vmatprep.subr.bf16.mxu0 0
    %1248 = vmatpush1.bf16.msra.mxu0 0
    %1249 = vmatprep.subr.bf16.mxu0 0
    %1250 = vmatpush1.bf16.msra.mxu0 0
    %1251 = vmatprep.subr.bf16.mxu0 0
    %1252 = vmatpush1.bf16.msra.mxu0 0
    %1253 = vmatprep.subr.bf16.mxu0 0
    %1254 = vmatpush1.bf16.msra.mxu0 0
    %1255 = vmatprep.subr.bf16.mxu0 0
    %1256 = vmatpush1.bf16.msra.mxu0 0
    %1257 = vmatprep.subr.bf16.mxu0 0
    %1258 = vmatpush1.bf16.msra.mxu0 0
    %1259 = vmatprep.subr.bf16.mxu0 0
    %1260 = vmatpush1.bf16.msra.mxu0 0
    %1261 = vmatprep.subr.bf16.mxu0 0
    %1262 = vmatpush1.bf16.msra.mxu0 %v1242
    %1263 = vmatprep.subr.bf16.mxu0 0
    %1264 = vmatpush2.bf16.msra.mxu0 0
    %1265 = vmatprep.subr.bf16.mxu0 0
    %1266 = vmatpush2.bf16.msra.mxu0 0
    %1267 = vmatprep.subr.bf16.mxu0 0
    %1268 = vmatpush2.bf16.msra.mxu0 0
    %1269 = vmatprep.subr.bf16.mxu0 0
    %1270 = vmatpush2.bf16.msra.mxu0 0
    %1271 = vmatprep.subr.bf16.mxu0 0
    %1272 = vmatpush2.bf16.msra.mxu0 0
    %1273 = vmatprep.subr.bf16.mxu0 0
    %1274 = vmatpush2.bf16.msra.mxu0 0
    %1275 = vmatprep.subr.bf16.mxu0 0
    %1276 = vmatpush2.bf16.msra.mxu0 0
    %1277 = vmatprep.subr.bf16.mxu0 0
    %1278 = vmatpush2.bf16.msra.mxu0 0
    %1279 = vmatprep.mubr.bf16.mxu0 0
    %1280 = vmatmul.mubr.bf16.gmra.mxu0 %v1245
    %v1281 = vpop.f32.mrf.mxu0
    %v1282 = vadd.f32 0.0, %v1281
    %v1283 = vpop.f32.mrf.mxu0
    %v1284 = vpop.f32.mrf.mxu0
    %v1285 = vpop.f32.mrf.mxu0
    %1286 = vdwg.mxu0
    %v1287 = vadd.f32 %v1221, %v1282
    %v1288 = vmul.f32 %v1287, %v300
    %v1289 = vadd.f32 %v1288, %v307
    %vm1290 = vcmp.ge.f32.partialorder %v1289, 0.0
    %v1291 = vmul.f32 %v1289, 0.2
    %v1292 = vsel %vm1290, %v1289, %v1291
    %1293 = vst [vmem:[#allocation7 + $0x20] sm:$0xff] %v1292
    %v1294 = vld [vmem:[%s1168] sm:$0xf]
    %v1295 = vld [vmem:[#allocation5] sm:$0xf]
    %v1296 = vld [vmem:[#allocation5 + $0x4] sm:$0xf]
    %v1297 = vld [vmem:[%s1168 + $0x4] sm:$0x1]
    %v1298 = vld [vmem:[%s57] sm:$0xf]
    %v1299 = vld [vmem:[%s57 + $0x4] sm:$0xf]
    %v1302 = vunpack.c.l.b16 %v1294
    %v1303 = vunpack.c.l.b16 %v1297
    %v1304 = vpack.c.b16 %v1303, %v1302
    %v1306 = vshrl.u32 %v1304, 16
    %v1308 = vshll.u32 %v1304, 16
    %v1310 = vrot.slane %v1308, 1
    %v1311 = vor.u32 %v1306, %v1310
    %v1314 = vunpack.c.l.b16 %v1298
    %v1315 = vunpack.c.l.b16 %v1299
    %v1316 = vpack.c.b16 %v1315, %v1314
    %v1319 = vsel %vm78, %v1311, 0
    %1321 = vmatprep.subr.bf16.mxu0 0
    %1322 = vmatpush1.bf16.msra.mxu0 0
    %1323 = vmatprep.subr.bf16.mxu0 0
    %1324 = vmatpush1.bf16.msra.mxu0 0
    %1325 = vmatprep.subr.bf16.mxu0 0
    %1326 = vmatpush1.bf16.msra.mxu0 0
    %1327 = vmatprep.subr.bf16.mxu0 0
    %1328 = vmatpush1.bf16.msra.mxu0 0
    %1329 = vmatprep.subr.bf16.mxu0 0
    %1330 = vmatpush1.bf16.msra.mxu0 0
    %1331 = vmatprep.subr.bf16.mxu0 0
    %1332 = vmatpush1.bf16.msra.mxu0 0
    %1333 = vmatprep.subr.bf16.mxu0 0
    %1334 = vmatpush1.bf16.msra.mxu0 0
    %1335 = vmatprep.subr.bf16.mxu0 0
    %1336 = vmatpush1.bf16.msra.mxu0 %v1316
    %1337 = vmatprep.subr.bf16.mxu0 0
    %1338 = vmatpush2.bf16.msra.mxu0 0
    %1339 = vmatprep.subr.bf16.mxu0 0
    %1340 = vmatpush2.bf16.msra.mxu0 0
    %1341 = vmatprep.subr.bf16.mxu0 0
    %1342 = vmatpush2.bf16.msra.mxu0 0
    %1343 = vmatprep.subr.bf16.mxu0 0
    %1344 = vmatpush2.bf16.msra.mxu0 0
    %1345 = vmatprep.subr.bf16.mxu0 0
    %1346 = vmatpush2.bf16.msra.mxu0 0
    %1347 = vmatprep.subr.bf16.mxu0 0
    %1348 = vmatpush2.bf16.msra.mxu0 0
    %1349 = vmatprep.subr.bf16.mxu0 0
    %1350 = vmatpush2.bf16.msra.mxu0 0
    %1351 = vmatprep.subr.bf16.mxu0 0
    %1352 = vmatpush2.bf16.msra.mxu0 0
    %1353 = vmatprep.mubr.bf16.mxu0 0
    %1354 = vmatmul.mubr.bf16.gmra.mxu0 %v1319
    %v1355 = vpop.f32.mrf.mxu0
    %v1356 = vadd.f32 0.0, %v1355
    %v1357 = vpop.f32.mrf.mxu0
    %v1358 = vpop.f32.mrf.mxu0
    %v1359 = vpop.f32.mrf.mxu0
    %1360 = vdwg.mxu0
    %v1363 = vunpack.c.l.b16 %v1295
    %v1364 = vunpack.c.l.b16 %v1296
    %v1365 = vpack.c.b16 %v1364, %v1363
    %v1368 = vsel %vm78, %v1294, 0
    %1370 = vmatprep.subr.bf16.mxu0 0
    %1371 = vmatpush1.bf16.msra.mxu0 0
    %1372 = vmatprep.subr.bf16.mxu0 0
    %1373 = vmatpush1.bf16.msra.mxu0 0
    %1374 = vmatprep.subr.bf16.mxu0 0
    %1375 = vmatpush1.bf16.msra.mxu0 0
    %1376 = vmatprep.subr.bf16.mxu0 0
    %1377 = vmatpush1.bf16.msra.mxu0 0
    %1378 = vmatprep.subr.bf16.mxu0 0
    %1379 = vmatpush1.bf16.msra.mxu0 0
    %1380 = vmatprep.subr.bf16.mxu0 0
    %1381 = vmatpush1.bf16.msra.mxu0 0
    %1382 = vmatprep.subr.bf16.mxu0 0
    %1383 = vmatpush1.bf16.msra.mxu0 0
    %1384 = vmatprep.subr.bf16.mxu0 0
    %1385 = vmatpush1.bf16.msra.mxu0 %v1365
    %1386 = vmatprep.subr.bf16.mxu0 0
    %1387 = vmatpush2.bf16.msra.mxu0 0
    %1388 = vmatprep.subr.bf16.mxu0 0
    %1389 = vmatpush2.bf16.msra.mxu0 0
    %1390 = vmatprep.subr.bf16.mxu0 0
    %1391 = vmatpush2.bf16.msra.mxu0 0
    %1392 = vmatprep.subr.bf16.mxu0 0
    %1393 = vmatpush2.bf16.msra.mxu0 0
    %1394 = vmatprep.subr.bf16.mxu0 0
    %1395 = vmatpush2.bf16.msra.mxu0 0
    %1396 = vmatprep.subr.bf16.mxu0 0
    %1397 = vmatpush2.bf16.msra.mxu0 0
    %1398 = vmatprep.subr.bf16.mxu0 0
    %1399 = vmatpush2.bf16.msra.mxu0 0
    %1400 = vmatprep.subr.bf16.mxu0 0
    %1401 = vmatpush2.bf16.msra.mxu0 0
    %1402 = vmatprep.mubr.bf16.mxu0 0
    %1403 = vmatmul.mubr.bf16.gmra.mxu0 %v1368
    %v1404 = vpop.f32.mrf.mxu0
    %v1405 = vadd.f32 %v1356, %v1404
    %v1406 = vpop.f32.mrf.mxu0
    %v1407 = vpop.f32.mrf.mxu0
    %v1408 = vpop.f32.mrf.mxu0
    %1409 = vdwg.mxu0
    %s1410 = sadd.s32 %s49, 6
    %s1411 = smul.u32 %s1410, 2
    %s1412 = smul.addr %s1411, 4
    %s1413 = scalar_lea.vmem [#allocation2], %s1412
    %v1414 = vld [vmem:[%s1413] sm:$0xf]
    %v1415 = vld [vmem:[%s176] sm:$0xf]
    %v1416 = vld [vmem:[%s176 + $0x4] sm:$0xf]
    %v1419 = vunpack.c.l.b16 %v1415
    %v1420 = vunpack.c.l.b16 %v1416
    %v1421 = vpack.c.b16 %v1420, %v1419
    %v1424 = vsel %vm78, %v1414, 0
    %1426 = vmatprep.subr.bf16.mxu0 0
    %1427 = vmatpush1.bf16.msra.mxu0 0
    %1428 = vmatprep.subr.bf16.mxu0 0
    %1429 = vmatpush1.bf16.msra.mxu0 0
    %1430 = vmatprep.subr.bf16.mxu0 0
    %1431 = vmatpush1.bf16.msra.mxu0 0
    %1432 = vmatprep.subr.bf16.mxu0 0
    %1433 = vmatpush1.bf16.msra.mxu0 0
    %1434 = vmatprep.subr.bf16.mxu0 0
    %1435 = vmatpush1.bf16.msra.mxu0 0
    %1436 = vmatprep.subr.bf16.mxu0 0
    %1437 = vmatpush1.bf16.msra.mxu0 0
    %1438 = vmatprep.subr.bf16.mxu0 0
    %1439 = vmatpush1.bf16.msra.mxu0 0
    %1440 = vmatprep.subr.bf16.mxu0 0
    %1441 = vmatpush1.bf16.msra.mxu0 %v1421
    %1442 = vmatprep.subr.bf16.mxu0 0
    %1443 = vmatpush2.bf16.msra.mxu0 0
    %1444 = vmatprep.subr.bf16.mxu0 0
    %1445 = vmatpush2.bf16.msra.mxu0 0
    %1446 = vmatprep.subr.bf16.mxu0 0
    %1447 = vmatpush2.bf16.msra.mxu0 0
    %1448 = vmatprep.subr.bf16.mxu0 0
    %1449 = vmatpush2.bf16.msra.mxu0 0
    %1450 = vmatprep.subr.bf16.mxu0 0
    %1451 = vmatpush2.bf16.msra.mxu0 0
    %1452 = vmatprep.subr.bf16.mxu0 0
    %1453 = vmatpush2.bf16.msra.mxu0 0
    %1454 = vmatprep.subr.bf16.mxu0 0
    %1455 = vmatpush2.bf16.msra.mxu0 0
    %1456 = vmatprep.subr.bf16.mxu0 0
    %1457 = vmatpush2.bf16.msra.mxu0 0
    %1458 = vmatprep.mubr.bf16.mxu0 0
    %1459 = vmatmul.mubr.bf16.gmra.mxu0 %v1424
    %v1460 = vpop.f32.mrf.mxu0
    %v1461 = vadd.f32 0.0, %v1460
    %v1462 = vpop.f32.mrf.mxu0
    %v1463 = vpop.f32.mrf.mxu0
    %v1464 = vpop.f32.mrf.mxu0
    %1465 = vdwg.mxu0
    %v1466 = vadd.f32 %v1405, %v1461
    %v1467 = vld [vmem:[%s1413] sm:$0xf]
    %v1468 = vld [vmem:[%s1413 + $0x4] sm:$0x1]
    %v1469 = vld [vmem:[%s231] sm:$0xf]
    %v1470 = vld [vmem:[%s231 + $0x4] sm:$0xf]
    %v1473 = vunpack.c.l.b16 %v1467
    %v1474 = vunpack.c.l.b16 %v1468
    %v1475 = vpack.c.b16 %v1474, %v1473
    %v1477 = vshrl.u32 %v1475, 16
    %v1479 = vshll.u32 %v1475, 16
    %v1481 = vrot.slane %v1479, 1
    %v1482 = vor.u32 %v1477, %v1481
    %v1485 = vunpack.c.l.b16 %v1469
    %v1486 = vunpack.c.l.b16 %v1470
    %v1487 = vpack.c.b16 %v1486, %v1485
    %v1490 = vsel %vm78, %v1482, 0
    %1492 = vmatprep.subr.bf16.mxu0 0
    %1493 = vmatpush1.bf16.msra.mxu0 0
    %1494 = vmatprep.subr.bf16.mxu0 0
    %1495 = vmatpush1.bf16.msra.mxu0 0
    %1496 = vmatprep.subr.bf16.mxu0 0
    %1497 = vmatpush1.bf16.msra.mxu0 0
    %1498 = vmatprep.subr.bf16.mxu0 0
    %1499 = vmatpush1.bf16.msra.mxu0 0
    %1500 = vmatprep.subr.bf16.mxu0 0
    %1501 = vmatpush1.bf16.msra.mxu0 0
    %1502 = vmatprep.subr.bf16.mxu0 0
    %1503 = vmatpush1.bf16.msra.mxu0 0
    %1504 = vmatprep.subr.bf16.mxu0 0
    %1505 = vmatpush1.bf16.msra.mxu0 0
    %1506 = vmatprep.subr.bf16.mxu0 0
    %1507 = vmatpush1.bf16.msra.mxu0 %v1487
    %1508 = vmatprep.subr.bf16.mxu0 0
    %1509 = vmatpush2.bf16.msra.mxu0 0
    %1510 = vmatprep.subr.bf16.mxu0 0
    %1511 = vmatpush2.bf16.msra.mxu0 0
    %1512 = vmatprep.subr.bf16.mxu0 0
    %1513 = vmatpush2.bf16.msra.mxu0 0
    %1514 = vmatprep.subr.bf16.mxu0 0
    %1515 = vmatpush2.bf16.msra.mxu0 0
    %1516 = vmatprep.subr.bf16.mxu0 0
    %1517 = vmatpush2.bf16.msra.mxu0 0
    %1518 = vmatprep.subr.bf16.mxu0 0
    %1519 = vmatpush2.bf16.msra.mxu0 0
    %1520 = vmatprep.subr.bf16.mxu0 0
    %1521 = vmatpush2.bf16.msra.mxu0 0
    %1522 = vmatprep.subr.bf16.mxu0 0
    %1523 = vmatpush2.bf16.msra.mxu0 0
    %1524 = vmatprep.mubr.bf16.mxu0 0
    %1525 = vmatmul.mubr.bf16.gmra.mxu0 %v1490
    %v1526 = vpop.f32.mrf.mxu0
    %v1527 = vadd.f32 0.0, %v1526
    %v1528 = vpop.f32.mrf.mxu0
    %v1529 = vpop.f32.mrf.mxu0
    %v1530 = vpop.f32.mrf.mxu0
    %1531 = vdwg.mxu0
    %v1532 = vadd.f32 %v1466, %v1527
    %v1533 = vmul.f32 %v1532, %v300
    %v1534 = vadd.f32 %v1533, %v307
    %vm1535 = vcmp.ge.f32.partialorder %v1534, 0.0
    %v1536 = vmul.f32 %v1534, 0.2
    %v1537 = vsel %vm1535, %v1534, %v1536
    %1538 = vst [vmem:[#allocation7 + $0x28] sm:$0xff] %v1537
    %v1539 = vld [vmem:[%s1413] sm:$0xf]
    %v1540 = vld [vmem:[#allocation5] sm:$0xf]
    %v1541 = vld [vmem:[#allocation5 + $0x4] sm:$0xf]
    %v1542 = vld [vmem:[%s1413 + $0x4] sm:$0x1]
    %v1543 = vld [vmem:[%s57] sm:$0xf]
    %v1544 = vld [vmem:[%s57 + $0x4] sm:$0xf]
    %v1547 = vunpack.c.l.b16 %v1539
    %v1548 = vunpack.c.l.b16 %v1542
    %v1549 = vpack.c.b16 %v1548, %v1547
    %v1551 = vshrl.u32 %v1549, 16
    %v1553 = vshll.u32 %v1549, 16
    %v1555 = vrot.slane %v1553, 1
    %v1556 = vor.u32 %v1551, %v1555
    %v1559 = vunpack.c.l.b16 %v1543
    %v1560 = vunpack.c.l.b16 %v1544
    %v1561 = vpack.c.b16 %v1560, %v1559
    %v1564 = vsel %vm78, %v1556, 0
    %1566 = vmatprep.subr.bf16.mxu0 0
    %1567 = vmatpush1.bf16.msra.mxu0 0
    %1568 = vmatprep.subr.bf16.mxu0 0
    %1569 = vmatpush1.bf16.msra.mxu0 0
    %1570 = vmatprep.subr.bf16.mxu0 0
    %1571 = vmatpush1.bf16.msra.mxu0 0
    %1572 = vmatprep.subr.bf16.mxu0 0
    %1573 = vmatpush1.bf16.msra.mxu0 0
    %1574 = vmatprep.subr.bf16.mxu0 0
    %1575 = vmatpush1.bf16.msra.mxu0 0
    %1576 = vmatprep.subr.bf16.mxu0 0
    %1577 = vmatpush1.bf16.msra.mxu0 0
    %1578 = vmatprep.subr.bf16.mxu0 0
    %1579 = vmatpush1.bf16.msra.mxu0 0
    %1580 = vmatprep.subr.bf16.mxu0 0
    %1581 = vmatpush1.bf16.msra.mxu0 %v1561
    %1582 = vmatprep.subr.bf16.mxu0 0
    %1583 = vmatpush2.bf16.msra.mxu0 0
    %1584 = vmatprep.subr.bf16.mxu0 0
    %1585 = vmatpush2.bf16.msra.mxu0 0
    %1586 = vmatprep.subr.bf16.mxu0 0
    %1587 = vmatpush2.bf16.msra.mxu0 0
    %1588 = vmatprep.subr.bf16.mxu0 0
    %1589 = vmatpush2.bf16.msra.mxu0 0
    %1590 = vmatprep.subr.bf16.mxu0 0
    %1591 = vmatpush2.bf16.msra.mxu0 0
    %1592 = vmatprep.subr.bf16.mxu0 0
    %1593 = vmatpush2.bf16.msra.mxu0 0
    %1594 = vmatprep.subr.bf16.mxu0 0
    %1595 = vmatpush2.bf16.msra.mxu0 0
    %1596 = vmatprep.subr.bf16.mxu0 0
    %1597 = vmatpush2.bf16.msra.mxu0 0
    %1598 = vmatprep.mubr.bf16.mxu0 0
    %1599 = vmatmul.mubr.bf16.gmra.mxu0 %v1564
    %v1600 = vpop.f32.mrf.mxu0
    %v1601 = vadd.f32 0.0, %v1600
    %v1602 = vpop.f32.mrf.mxu0
    %v1603 = vpop.f32.mrf.mxu0
    %v1604 = vpop.f32.mrf.mxu0
    %1605 = vdwg.mxu0
    %v1608 = vunpack.c.l.b16 %v1540
    %v1609 = vunpack.c.l.b16 %v1541
    %v1610 = vpack.c.b16 %v1609, %v1608
    %v1613 = vsel %vm78, %v1539, 0
    %1615 = vmatprep.subr.bf16.mxu0 0
    %1616 = vmatpush1.bf16.msra.mxu0 0
    %1617 = vmatprep.subr.bf16.mxu0 0
    %1618 = vmatpush1.bf16.msra.mxu0 0
    %1619 = vmatprep.subr.bf16.mxu0 0
    %1620 = vmatpush1.bf16.msra.mxu0 0
    %1621 = vmatprep.subr.bf16.mxu0 0
    %1622 = vmatpush1.bf16.msra.mxu0 0
    %1623 = vmatprep.subr.bf16.mxu0 0
    %1624 = vmatpush1.bf16.msra.mxu0 0
    %1625 = vmatprep.subr.bf16.mxu0 0
    %1626 = vmatpush1.bf16.msra.mxu0 0
    %1627 = vmatprep.subr.bf16.mxu0 0
    %1628 = vmatpush1.bf16.msra.mxu0 0
    %1629 = vmatprep.subr.bf16.mxu0 0
    %1630 = vmatpush1.bf16.msra.mxu0 %v1610
    %1631 = vmatprep.subr.bf16.mxu0 0
    %1632 = vmatpush2.bf16.msra.mxu0 0
    %1633 = vmatprep.subr.bf16.mxu0 0
    %1634 = vmatpush2.bf16.msra.mxu0 0
    %1635 = vmatprep.subr.bf16.mxu0 0
    %1636 = vmatpush2.bf16.msra.mxu0 0
    %1637 = vmatprep.subr.bf16.mxu0 0
    %1638 = vmatpush2.bf16.msra.mxu0 0
    %1639 = vmatprep.subr.bf16.mxu0 0
    %1640 = vmatpush2.bf16.msra.mxu0 0
    %1641 = vmatprep.subr.bf16.mxu0 0
    %1642 = vmatpush2.bf16.msra.mxu0 0
    %1643 = vmatprep.subr.bf16.mxu0 0
    %1644 = vmatpush2.bf16.msra.mxu0 0
    %1645 = vmatprep.subr.bf16.mxu0 0
    %1646 = vmatpush2.bf16.msra.mxu0 0
    %1647 = vmatprep.mubr.bf16.mxu0 0
    %1648 = vmatmul.mubr.bf16.gmra.mxu0 %v1613
    %v1649 = vpop.f32.mrf.mxu0
    %v1650 = vadd.f32 %v1601, %v1649
    %v1651 = vpop.f32.mrf.mxu0
    %v1652 = vpop.f32.mrf.mxu0
    %v1653 = vpop.f32.mrf.mxu0
    %1654 = vdwg.mxu0
    %s1655 = sadd.s32 %s49, 7
    %s1656 = smul.u32 %s1655, 2
    %s1657 = smul.addr %s1656, 4
    %s1658 = scalar_lea.vmem [#allocation2], %s1657
    %v1659 = vld [vmem:[%s1658] sm:$0xf]
    %v1660 = vld [vmem:[%s176] sm:$0xf]
    %v1661 = vld [vmem:[%s176 + $0x4] sm:$0xf]
    %v1664 = vunpack.c.l.b16 %v1660
    %v1665 = vunpack.c.l.b16 %v1661
    %v1666 = vpack.c.b16 %v1665, %v1664
    %v1669 = vsel %vm78, %v1659, 0
    %1671 = vmatprep.subr.bf16.mxu0 0
    %1672 = vmatpush1.bf16.msra.mxu0 0
    %1673 = vmatprep.subr.bf16.mxu0 0
    %1674 = vmatpush1.bf16.msra.mxu0 0
    %1675 = vmatprep.subr.bf16.mxu0 0
    %1676 = vmatpush1.bf16.msra.mxu0 0
    %1677 = vmatprep.subr.bf16.mxu0 0
    %1678 = vmatpush1.bf16.msra.mxu0 0
    %1679 = vmatprep.subr.bf16.mxu0 0
    %1680 = vmatpush1.bf16.msra.mxu0 0
    %1681 = vmatprep.subr.bf16.mxu0 0
    %1682 = vmatpush1.bf16.msra.mxu0 0
    %1683 = vmatprep.subr.bf16.mxu0 0
    %1684 = vmatpush1.bf16.msra.mxu0 0
    %1685 = vmatprep.subr.bf16.mxu0 0
    %1686 = vmatpush1.bf16.msra.mxu0 %v1666
    %1687 = vmatprep.subr.bf16.mxu0 0
    %1688 = vmatpush2.bf16.msra.mxu0 0
    %1689 = vmatprep.subr.bf16.mxu0 0
    %1690 = vmatpush2.bf16.msra.mxu0 0
    %1691 = vmatprep.subr.bf16.mxu0 0
    %1692 = vmatpush2.bf16.msra.mxu0 0
    %1693 = vmatprep.subr.bf16.mxu0 0
    %1694 = vmatpush2.bf16.msra.mxu0 0
    %1695 = vmatprep.subr.bf16.mxu0 0
    %1696 = vmatpush2.bf16.msra.mxu0 0
    %1697 = vmatprep.subr.bf16.mxu0 0
    %1698 = vmatpush2.bf16.msra.mxu0 0
    %1699 = vmatprep.subr.bf16.mxu0 0
    %1700 = vmatpush2.bf16.msra.mxu0 0
    %1701 = vmatprep.subr.bf16.mxu0 0
    %1702 = vmatpush2.bf16.msra.mxu0 0
    %1703 = vmatprep.mubr.bf16.mxu0 0
    %1704 = vmatmul.mubr.bf16.gmra.mxu0 %v1669
    %v1705 = vpop.f32.mrf.mxu0
    %v1706 = vadd.f32 0.0, %v1705
    %v1707 = vpop.f32.mrf.mxu0
    %v1708 = vpop.f32.mrf.mxu0
    %v1709 = vpop.f32.mrf.mxu0
    %1710 = vdwg.mxu0
    %v1711 = vadd.f32 %v1650, %v1706
    %v1712 = vld [vmem:[%s1658] sm:$0xf]
    %v1713 = vld [vmem:[%s1658 + $0x4] sm:$0x1]
    %v1714 = vld [vmem:[%s231] sm:$0xf]
    %v1715 = vld [vmem:[%s231 + $0x4] sm:$0xf]
    %v1718 = vunpack.c.l.b16 %v1712
    %v1719 = vunpack.c.l.b16 %v1713
    %v1720 = vpack.c.b16 %v1719, %v1718
    %v1722 = vshrl.u32 %v1720, 16
    %v1724 = vshll.u32 %v1720, 16
    %v1726 = vrot.slane %v1724, 1
    %v1727 = vor.u32 %v1722, %v1726
    %v1730 = vunpack.c.l.b16 %v1714
    %v1731 = vunpack.c.l.b16 %v1715
    %v1732 = vpack.c.b16 %v1731, %v1730
    %v1735 = vsel %vm78, %v1727, 0
    %1737 = vmatprep.subr.bf16.mxu0 0
    %1738 = vmatpush1.bf16.msra.mxu0 0
    %1739 = vmatprep.subr.bf16.mxu0 0
    %1740 = vmatpush1.bf16.msra.mxu0 0
    %1741 = vmatprep.subr.bf16.mxu0 0
    %1742 = vmatpush1.bf16.msra.mxu0 0
    %1743 = vmatprep.subr.bf16.mxu0 0
    %1744 = vmatpush1.bf16.msra.mxu0 0
    %1745 = vmatprep.subr.bf16.mxu0 0
    %1746 = vmatpush1.bf16.msra.mxu0 0
    %1747 = vmatprep.subr.bf16.mxu0 0
    %1748 = vmatpush1.bf16.msra.mxu0 0
    %1749 = vmatprep.subr.bf16.mxu0 0
    %1750 = vmatpush1.bf16.msra.mxu0 0
    %1751 = vmatprep.subr.bf16.mxu0 0
    %1752 = vmatpush1.bf16.msra.mxu0 %v1732
    %1753 = vmatprep.subr.bf16.mxu0 0
    %1754 = vmatpush2.bf16.msra.mxu0 0
    %1755 = vmatprep.subr.bf16.mxu0 0
    %1756 = vmatpush2.bf16.msra.mxu0 0
    %1757 = vmatprep.subr.bf16.mxu0 0
    %1758 = vmatpush2.bf16.msra.mxu0 0
    %1759 = vmatprep.subr.bf16.mxu0 0
    %1760 = vmatpush2.bf16.msra.mxu0 0
    %1761 = vmatprep.subr.bf16.mxu0 0
    %1762 = vmatpush2.bf16.msra.mxu0 0
    %1763 = vmatprep.subr.bf16.mxu0 0
    %1764 = vmatpush2.bf16.msra.mxu0 0
    %1765 = vmatprep.subr.bf16.mxu0 0
    %1766 = vmatpush2.bf16.msra.mxu0 0
    %1767 = vmatprep.subr.bf16.mxu0 0
    %1768 = vmatpush2.bf16.msra.mxu0 0
    %1769 = vmatprep.mubr.bf16.mxu0 0
    %1770 = vmatmul.mubr.bf16.gmra.mxu0 %v1735
    %v1771 = vpop.f32.mrf.mxu0
    %v1772 = vadd.f32 0.0, %v1771
    %v1773 = vpop.f32.mrf.mxu0
    %v1774 = vpop.f32.mrf.mxu0
    %v1775 = vpop.f32.mrf.mxu0
    %1776 = vdwg.mxu0
    %v1777 = vadd.f32 %v1711, %v1772
    %v1778 = vmul.f32 %v1777, %v300
    %v1779 = vadd.f32 %v1778, %v307
    %vm1780 = vcmp.ge.f32.partialorder %v1779, 0.0
    %v1781 = vmul.f32 %v1779, 0.2
    %v1782 = vsel %vm1780, %v1779, %v1781
    %1783 = vst [vmem:[#allocation7 + $0x30] sm:$0xff] %v1782
    %v1784 = vld [vmem:[%s1658] sm:$0xf]
    %v1785 = vld [vmem:[#allocation5] sm:$0xf]
    %v1786 = vld [vmem:[#allocation5 + $0x4] sm:$0xf]
    %v1787 = vld [vmem:[%s1658 + $0x4] sm:$0x1]
    %v1788 = vld [vmem:[%s57] sm:$0xf]
    %v1789 = vld [vmem:[%s57 + $0x4] sm:$0xf]
    %v1792 = vunpack.c.l.b16 %v1784
    %v1793 = vunpack.c.l.b16 %v1787
    %v1794 = vpack.c.b16 %v1793, %v1792
    %v1796 = vshrl.u32 %v1794, 16
    %v1798 = vshll.u32 %v1794, 16
    %v1800 = vrot.slane %v1798, 1
    %v1801 = vor.u32 %v1796, %v1800
    %v1804 = vunpack.c.l.b16 %v1788
    %v1805 = vunpack.c.l.b16 %v1789
    %v1806 = vpack.c.b16 %v1805, %v1804
    %v1809 = vsel %vm78, %v1801, 0
    %1811 = vmatprep.subr.bf16.mxu0 0
    %1812 = vmatpush1.bf16.msra.mxu0 0
    %1813 = vmatprep.subr.bf16.mxu0 0
    %1814 = vmatpush1.bf16.msra.mxu0 0
    %1815 = vmatprep.subr.bf16.mxu0 0
    %1816 = vmatpush1.bf16.msra.mxu0 0
    %1817 = vmatprep.subr.bf16.mxu0 0
    %1818 = vmatpush1.bf16.msra.mxu0 0
    %1819 = vmatprep.subr.bf16.mxu0 0
    %1820 = vmatpush1.bf16.msra.mxu0 0
    %1821 = vmatprep.subr.bf16.mxu0 0
    %1822 = vmatpush1.bf16.msra.mxu0 0
    %1823 = vmatprep.subr.bf16.mxu0 0
    %1824 = vmatpush1.bf16.msra.mxu0 0
    %1825 = vmatprep.subr.bf16.mxu0 0
    %1826 = vmatpush1.bf16.msra.mxu0 %v1806
    %1827 = vmatprep.subr.bf16.mxu0 0
    %1828 = vmatpush2.bf16.msra.mxu0 0
    %1829 = vmatprep.subr.bf16.mxu0 0
    %1830 = vmatpush2.bf16.msra.mxu0 0
    %1831 = vmatprep.subr.bf16.mxu0 0
    %1832 = vmatpush2.bf16.msra.mxu0 0
    %1833 = vmatprep.subr.bf16.mxu0 0
    %1834 = vmatpush2.bf16.msra.mxu0 0
    %1835 = vmatprep.subr.bf16.mxu0 0
    %1836 = vmatpush2.bf16.msra.mxu0 0
    %1837 = vmatprep.subr.bf16.mxu0 0
    %1838 = vmatpush2.bf16.msra.mxu0 0
    %1839 = vmatprep.subr.bf16.mxu0 0
    %1840 = vmatpush2.bf16.msra.mxu0 0
    %1841 = vmatprep.subr.bf16.mxu0 0
    %1842 = vmatpush2.bf16.msra.mxu0 0
    %1843 = vmatprep.mubr.bf16.mxu0 0
    %1844 = vmatmul.mubr.bf16.gmra.mxu0 %v1809
    %v1845 = vpop.f32.mrf.mxu0
    %v1846 = vadd.f32 0.0, %v1845
    %v1847 = vpop.f32.mrf.mxu0
    %v1848 = vpop.f32.mrf.mxu0
    %v1849 = vpop.f32.mrf.mxu0
    %1850 = vdwg.mxu0
    %v1853 = vunpack.c.l.b16 %v1785
    %v1854 = vunpack.c.l.b16 %v1786
    %v1855 = vpack.c.b16 %v1854, %v1853
    %v1858 = vsel %vm78, %v1784, 0
    %1860 = vmatprep.subr.bf16.mxu0 0
    %1861 = vmatpush1.bf16.msra.mxu0 0
    %1862 = vmatprep.subr.bf16.mxu0 0
    %1863 = vmatpush1.bf16.msra.mxu0 0
    %1864 = vmatprep.subr.bf16.mxu0 0
    %1865 = vmatpush1.bf16.msra.mxu0 0
    %1866 = vmatprep.subr.bf16.mxu0 0
    %1867 = vmatpush1.bf16.msra.mxu0 0
    %1868 = vmatprep.subr.bf16.mxu0 0
    %1869 = vmatpush1.bf16.msra.mxu0 0
    %1870 = vmatprep.subr.bf16.mxu0 0
    %1871 = vmatpush1.bf16.msra.mxu0 0
    %1872 = vmatprep.subr.bf16.mxu0 0
    %1873 = vmatpush1.bf16.msra.mxu0 0
    %1874 = vmatprep.subr.bf16.mxu0 0
    %1875 = vmatpush1.bf16.msra.mxu0 %v1855
    %1876 = vmatprep.subr.bf16.mxu0 0
    %1877 = vmatpush2.bf16.msra.mxu0 0
    %1878 = vmatprep.subr.bf16.mxu0 0
    %1879 = vmatpush2.bf16.msra.mxu0 0
    %1880 = vmatprep.subr.bf16.mxu0 0
    %1881 = vmatpush2.bf16.msra.mxu0 0
    %1882 = vmatprep.subr.bf16.mxu0 0
    %1883 = vmatpush2.bf16.msra.mxu0 0
    %1884 = vmatprep.subr.bf16.mxu0 0
    %1885 = vmatpush2.bf16.msra.mxu0 0
    %1886 = vmatprep.subr.bf16.mxu0 0
    %1887 = vmatpush2.bf16.msra.mxu0 0
    %1888 = vmatprep.subr.bf16.mxu0 0
    %1889 = vmatpush2.bf16.msra.mxu0 0
    %1890 = vmatprep.subr.bf16.mxu0 0
    %1891 = vmatpush2.bf16.msra.mxu0 0
    %1892 = vmatprep.mubr.bf16.mxu0 0
    %1893 = vmatmul.mubr.bf16.gmra.mxu0 %v1858
    %v1894 = vpop.f32.mrf.mxu0
    %v1895 = vadd.f32 %v1846, %v1894
    %v1896 = vpop.f32.mrf.mxu0
    %v1897 = vpop.f32.mrf.mxu0
    %v1898 = vpop.f32.mrf.mxu0
    %1899 = vdwg.mxu0
    %s1900 = sadd.s32 %s49, 8
    %s1901 = smul.u32 %s1900, 2
    %s1902 = smul.addr %s1901, 4
    %s1903 = scalar_lea.vmem [#allocation2], %s1902
    %v1904 = vld [vmem:[%s1903] sm:$0xf]
    %v1905 = vld [vmem:[%s176] sm:$0xf]
    %v1906 = vld [vmem:[%s176 + $0x4] sm:$0xf]
    %v1909 = vunpack.c.l.b16 %v1905
    %v1910 = vunpack.c.l.b16 %v1906
    %v1911 = vpack.c.b16 %v1910, %v1909
    %v1914 = vsel %vm78, %v1904, 0
    %1916 = vmatprep.subr.bf16.mxu0 0
    %1917 = vmatpush1.bf16.msra.mxu0 0
    %1918 = vmatprep.subr.bf16.mxu0 0
    %1919 = vmatpush1.bf16.msra.mxu0 0
    %1920 = vmatprep.subr.bf16.mxu0 0
    %1921 = vmatpush1.bf16.msra.mxu0 0
    %1922 = vmatprep.subr.bf16.mxu0 0
    %1923 = vmatpush1.bf16.msra.mxu0 0
    %1924 = vmatprep.subr.bf16.mxu0 0
    %1925 = vmatpush1.bf16.msra.mxu0 0
    %1926 = vmatprep.subr.bf16.mxu0 0
    %1927 = vmatpush1.bf16.msra.mxu0 0
    %1928 = vmatprep.subr.bf16.mxu0 0
    %1929 = vmatpush1.bf16.msra.mxu0 0
    %1930 = vmatprep.subr.bf16.mxu0 0
    %1931 = vmatpush1.bf16.msra.mxu0 %v1911
    %1932 = vmatprep.subr.bf16.mxu0 0
    %1933 = vmatpush2.bf16.msra.mxu0 0
    %1934 = vmatprep.subr.bf16.mxu0 0
    %1935 = vmatpush2.bf16.msra.mxu0 0
    %1936 = vmatprep.subr.bf16.mxu0 0
    %1937 = vmatpush2.bf16.msra.mxu0 0
    %1938 = vmatprep.subr.bf16.mxu0 0
    %1939 = vmatpush2.bf16.msra.mxu0 0
    %1940 = vmatprep.subr.bf16.mxu0 0
    %1941 = vmatpush2.bf16.msra.mxu0 0
    %1942 = vmatprep.subr.bf16.mxu0 0
    %1943 = vmatpush2.bf16.msra.mxu0 0
    %1944 = vmatprep.subr.bf16.mxu0 0
    %1945 = vmatpush2.bf16.msra.mxu0 0
    %1946 = vmatprep.subr.bf16.mxu0 0
    %1947 = vmatpush2.bf16.msra.mxu0 0
    %1948 = vmatprep.mubr.bf16.mxu0 0
    %1949 = vmatmul.mubr.bf16.gmra.mxu0 %v1914
    %v1950 = vpop.f32.mrf.mxu0
    %v1951 = vadd.f32 0.0, %v1950
    %v1952 = vpop.f32.mrf.mxu0
    %v1953 = vpop.f32.mrf.mxu0
    %v1954 = vpop.f32.mrf.mxu0
    %1955 = vdwg.mxu0
    %v1956 = vadd.f32 %v1895, %v1951
    %v1957 = vld [vmem:[%s1903] sm:$0xf]
    %v1958 = vld [vmem:[%s1903 + $0x4] sm:$0x1]
    %v1959 = vld [vmem:[%s231] sm:$0xf]
    %v1960 = vld [vmem:[%s231 + $0x4] sm:$0xf]
    %v1963 = vunpack.c.l.b16 %v1957
    %v1964 = vunpack.c.l.b16 %v1958
    %v1965 = vpack.c.b16 %v1964, %v1963
    %v1967 = vshrl.u32 %v1965, 16
    %v1969 = vshll.u32 %v1965, 16
    %v1971 = vrot.slane %v1969, 1
    %v1972 = vor.u32 %v1967, %v1971
    %v1975 = vunpack.c.l.b16 %v1959
    %v1976 = vunpack.c.l.b16 %v1960
    %v1977 = vpack.c.b16 %v1976, %v1975
    %v1980 = vsel %vm78, %v1972, 0
    %1982 = vmatprep.subr.bf16.mxu0 0
    %1983 = vmatpush1.bf16.msra.mxu0 0
    %1984 = vmatprep.subr.bf16.mxu0 0
    %1985 = vmatpush1.bf16.msra.mxu0 0
    %1986 = vmatprep.subr.bf16.mxu0 0
    %1987 = vmatpush1.bf16.msra.mxu0 0
    %1988 = vmatprep.subr.bf16.mxu0 0
    %1989 = vmatpush1.bf16.msra.mxu0 0
    %1990 = vmatprep.subr.bf16.mxu0 0
    %1991 = vmatpush1.bf16.msra.mxu0 0
    %1992 = vmatprep.subr.bf16.mxu0 0
    %1993 = vmatpush1.bf16.msra.mxu0 0
    %1994 = vmatprep.subr.bf16.mxu0 0
    %1995 = vmatpush1.bf16.msra.mxu0 0
    %1996 = vmatprep.subr.bf16.mxu0 0
    %1997 = vmatpush1.bf16.msra.mxu0 %v1977
    %1998 = vmatprep.subr.bf16.mxu0 0
    %1999 = vmatpush2.bf16.msra.mxu0 0
    %2000 = vmatprep.subr.bf16.mxu0 0
    %2001 = vmatpush2.bf16.msra.mxu0 0
    %2002 = vmatprep.subr.bf16.mxu0 0
    %2003 = vmatpush2.bf16.msra.mxu0 0
    %2004 = vmatprep.subr.bf16.mxu0 0
    %2005 = vmatpush2.bf16.msra.mxu0 0
    %2006 = vmatprep.subr.bf16.mxu0 0
    %2007 = vmatpush2.bf16.msra.mxu0 0
    %2008 = vmatprep.subr.bf16.mxu0 0
    %2009 = vmatpush2.bf16.msra.mxu0 0
    %2010 = vmatprep.subr.bf16.mxu0 0
    %2011 = vmatpush2.bf16.msra.mxu0 0
    %2012 = vmatprep.subr.bf16.mxu0 0
    %2013 = vmatpush2.bf16.msra.mxu0 0
    %2014 = vmatprep.mubr.bf16.mxu0 0
    %2015 = vmatmul.mubr.bf16.gmra.mxu0 %v1980
    %v2016 = vpop.f32.mrf.mxu0
    %v2017 = vadd.f32 0.0, %v2016
    %v2018 = vpop.f32.mrf.mxu0
    %v2019 = vpop.f32.mrf.mxu0
    %v2020 = vpop.f32.mrf.mxu0
    %2021 = vdwg.mxu0
    %v2022 = vadd.f32 %v1956, %v2017
    %v2023 = vmul.f32 %v2022, %v300
    %v2024 = vadd.f32 %v2023, %v307
    %vm2025 = vcmp.ge.f32.partialorder %v2024, 0.0
    %v2026 = vmul.f32 %v2024, 0.2
    %v2027 = vsel %vm2025, %v2024, %v2026
    %2028 = vst [vmem:[#allocation7 + $0x38] sm:$0xff] %v2027
    // Predicated region
    $region26: #{tpu_custom_call.1} parent=1 // pred_check
      _
    $region27: #{tpu_custom_call.1} parent=1 // pred_check_branch
      %2030 = sbr.rel (0) target = $region29
    $region28: #{tpu_custom_call.1} parent=1 // pred_region
      %s2032 = ssub.s32 1024, 1024
      %2033 = vsyncadd [#allocation4], %s2032
      %s2034 = sshll.u32 [#allocation7], 4
      %s2035 = int_to_ptr.vmem [resolvable:$true] %s2034
      %2040 = dma.vmem_to_hbm [thread:$0]  %s2035, 1024, %s4, [#allocation4], 128, 128, 8
    $region29: #{tpu_custom_call.1} parent=1 // pred_fallthru
      _
    // Predicated region
    $region30: #{tpu_custom_call.1} parent=1 // pred_check
      _
    $region31: #{tpu_custom_call.1} parent=1 // pred_check_branch
      %2042 = sbr.rel (0) target = $region33
    $region32: #{tpu_custom_call.1} parent=1 // pred_region
      %2043 = dma.done [#allocation4], 1024
    $region33: #{tpu_custom_call.1} parent=1 // pred_fallthru
      _
    %2044 = vsyncpa [#allocation3], 1
    %2045 = vsyncpa [#allocation6], 1
    %2046 = vsyncpa [#allocation4], 1

</llo_original>
